<compile_context>
chip_gen: v7x
topology: tpu7x:2x2x1
jax: 0.10.0
libtpu: 0.0.40
codegen_flags: <defaults>
</compile_context>

<pallas_src>
import functools

import jax
import jax.numpy as jnp
from jax.experimental import pallas as pl

LN_EPS = 1e-5
LANE = 128


def _round_up(x, m):
    return (x + m - 1) // m * m


def _pad_to(x, shape):
    pads = [(0, t - s) for s, t in zip(x.shape, shape)]
    return jnp.pad(x, pads)


def _layernorm(y, gamma, beta, d_real):
    """LayerNorm over the last dim (biased variance, matches torch).

    Padded lanes of `y` (if any) are exactly zero by construction, so
    mean = sum(y)/d_real is exact without masking.  Centered padded lanes
    each contribute mean^2 to sum(cen^2); that is subtracted analytically,
    keeping the stable two-pass formulation with no iota/mask VALU work.
    Padded output lanes are zeroed because gamma/beta are zero there.
    """
    d_pad = y.shape[-1]
    inv_d = 1.0 / d_real
    mean = jnp.sum(y, axis=-1, keepdims=True) * inv_d
    cen = y - mean
    sq = jnp.sum(cen * cen, axis=-1, keepdims=True)
    if d_pad != d_real:
        sq = sq - (d_pad - d_real) * (mean * mean)
    var = sq * inv_d
    return cen * jax.lax.rsqrt(var + LN_EPS) * gamma + beta


# ---------------------------------------------------------------------------
# Single fused kernel for the whole forward pass (gridless, full-array blocks).
# ---------------------------------------------------------------------------
def _robust_vlm_kernel(
        img_ref, enc_w_ref, vis_vecs_ref,
        comp_w_ref, comp_vecs_ref,
        dec_w_ref, proj_w_ref,
        hid_vecs_ref, txt_ref,
        head_w_ref, head_b_ref,
        vis_ref, logits_ref,
        *, comp_real, hidden_real):
    f32 = jnp.float32
    bf16 = jnp.bfloat16

    # Packed per-feature vectors (one DMA per slab, sliced in-register).
    vv = vis_vecs_ref[...]                       # [4, visual_dim]
    enc_b, dec_b, dec_g, dec_bt = vv[0:1], vv[1:2], vv[2:3], vv[3:4]
    cv = comp_vecs_ref[...]                      # [3, comp_pad]
    comp_b, comp_g, comp_bt = cv[0:1], cv[1:2], cv[2:3]
    hv = hid_vecs_ref[...]                       # [8 + S_pad, Hp]
    proj_b, lnf_g, lnf_bt = hv[0:1], hv[1:2], hv[2:3]
    wpe = hv[8:]                                 # [S_pad, Hp] (8-aligned slice)

    # --- visual encoder stub (torch.no_grad in the original) ----------------
    vf = jnp.dot(img_ref[...], enc_w_ref[...], preferred_element_type=f32)
    vf = vf + enc_b

    # --- FeatureCompressor: Linear -> ReLU -> LayerNorm ---------------------
    c = jnp.dot(vf.astype(bf16), comp_w_ref[...], preferred_element_type=f32)
    c = jnp.maximum(c + comp_b, 0.0)
    c = _layernorm(c, comp_g, comp_bt, comp_real)
    # (dropout p=0.6 is training-only -> identity in eval mode)

    # --- FeatureDecompressor: Linear -> ReLU -> LayerNorm -------------------
    d = jnp.dot(c.astype(bf16), dec_w_ref[...], preferred_element_type=f32)
    d = jnp.maximum(d + dec_b, 0.0)
    d = _layernorm(d, dec_g, dec_bt, d.shape[-1])

    # --- visual_to_text_projection -------------------------------------------
    vis = jnp.dot(d.astype(bf16), proj_w_ref[...], preferred_element_type=f32)
    vis = vis + proj_b
    vis_ref[...] = vis.astype(vis_ref.dtype)

    # --- decoder stub: fused [visual; text] token slab -> LN -> lm_head -----
    # txt_ref rows: row 0 is zero (visual slot), rows 1..T are wte gathers,
    # rows T+1..S_pad-1 are zero padding for sublane alignment.
    txt = txt_ref[...].astype(f32)                             # [B, S_pad, Hp]
    b, s_pad, hp = txt.shape
    is_vis = jax.lax.broadcasted_iota(jnp.int32, (b, s_pad, hp), 1) == 0
    h = jnp.where(is_vis, vis[:, None, :], txt) + wpe[None, :, :]
    x = _layernorm(h, lnf_g, lnf_bt, hidden_real)
    x2 = x.reshape(b * s_pad, hp)                              # aligned reshape
    lt = jnp.dot(x2.astype(bf16), head_w_ref[...], preferred_element_type=f32)
    logits_ref[...] = (lt + head_b_ref[...]).astype(logits_ref.dtype)


def _full_spec(shape):
    return pl.BlockSpec(shape, lambda: (0,) * len(shape))


# ---------------------------------------------------------------------------
# Forward wrapper (eval mode; host-side feature cache omitted).
# ---------------------------------------------------------------------------
def robust_vlm_forward(params, image, text):
    dims = params["dims"]
    B = image.shape[0]
    T = text.shape[1]
    Hp = params["proj_w"].shape[1]
    Vp = params["head_w"].shape[1]
    S = T + 1                                    # visual token + text tokens
    S_pad = _round_up(S, 8)                      # sublane-aligned token slab

    # Glue (XLA): flatten image, embedding gather (bf16), pack wpe slab.
    # TODO(synk): move the wte gather in-kernel via scalar-prefetched token
    # ids (PrefetchScalarGridSpec + pl.Element) at production hidden/T.
    img_flat = image.reshape(B, -1).astype(jnp.bfloat16)
    txt_emb = jnp.take(params["wte"], text, axis=0).astype(jnp.bfloat16)  # [B,T,Hp]
    txt_slab = jnp.pad(txt_emb, ((0, 0), (1, S_pad - S), (0, 0)))         # [B,S_pad,Hp]
    wpe_slab = _pad_to(params["wpe"][:S], (S_pad, Hp))                    # [S_pad,Hp]
    hid_vecs = jnp.concatenate([params["hid_vecs"], wpe_slab], axis=0)    # [8+S_pad,Hp]

    kernel = functools.partial(
        _robust_vlm_kernel,
        comp_real=dims["compressed"],
        hidden_real=dims["hidden"])

    operands = (
        img_flat, params["enc_w"], params["vis_vecs"],
        params["comp_w"], params["comp_vecs"],
        params["dec_w"], params["proj_w"],
        hid_vecs, txt_slab,
        params["head_w"], params["head_b"],
    )

    vis_pad, logits_pad = pl.pallas_call(
        kernel,
        out_shape=(
            jax.ShapeDtypeStruct((B, Hp), jnp.float32),           # visual_embeddings (padded)
            jax.ShapeDtypeStruct((B * S_pad, Vp), jnp.float32),   # all logits (padded)
        ),
        in_specs=[_full_spec(x.shape) for x in operands],
        out_specs=(
            _full_spec((B, Hp)),
            _full_spec((B * S_pad, Vp)),
        ),
    )(*operands)

    vocab = dims["vocab"]
    visual_embeddings = vis_pad[:, :dims["hidden"]]
    logits = logits_pad.reshape(B, S_pad, Vp)[:, :S, :vocab]      # [B, T+1, vocab]
    return {"logits": logits, "visual_embeddings": visual_embeddings}


# ---------------------------------------------------------------------------
# Deterministic parameter construction (scaled-down, lane-padded dims).
# Matmul weights are stored pre-transposed [in, out] in bf16.  All padded
# rows / cols / lanes (incl. LN gamma/beta) are zero, which is the invariant
# the mask-free LayerNorm relies on.
# ---------------------------------------------------------------------------
def make_params(key, img_feat_dim, visual_dim, compressed_dim, hidden, vocab,
                max_pos):
    comp_pad = _round_up(compressed_dim, LANE)
    hid_pad = _round_up(hidden, LANE)
    voc_pad = _round_up(vocab, LANE)

    keys = jax.random.split(key, 8)
    s = 0.02

    def w(k, din, dout, pad_shape):
        m = jax.random.normal(k, (din, dout), jnp.float32) * s
        return _pad_to(m, pad_shape).astype(jnp.bfloat16)

    def zeros(d):
        return jnp.zeros((1, d), jnp.float32)

    def ones_row(d_real, d_pad):
        return _pad_to(jnp.ones((1, d_real), jnp.float32), (1, d_pad))

    return {
        # visual encoder stub
        "enc_w": w(keys[0], img_feat_dim, visual_dim, (img_feat_dim, visual_dim)),
        # packed [enc_b, dec_b, dec_gamma, dec_beta] over visual_dim lanes
        "vis_vecs": jnp.concatenate(
            [zeros(visual_dim), zeros(visual_dim),
             jnp.ones((1, visual_dim), jnp.float32), zeros(visual_dim)], axis=0),
        # FeatureCompressor
        "comp_w": w(keys[1], visual_dim, compressed_dim, (visual_dim, comp_pad)),
        # packed [comp_b, comp_gamma, comp_beta] (gamma zero on padded lanes)
        "comp_vecs": jnp.concatenate(
            [zeros(comp_pad), ones_row(compressed_dim, comp_pad),
             zeros(comp_pad)], axis=0),
        # FeatureDecompressor
        "dec_w": w(keys[2], compressed_dim, visual_dim, (comp_pad, visual_dim)),
        # visual_to_text_projection
        "proj_w": w(keys[3], visual_dim, hidden, (visual_dim, hid_pad)),
        # packed [proj_b, lnf_gamma, lnf_beta] padded to 8 rows so the wpe
        # rows appended in the wrapper start at a sublane-tile boundary
        "hid_vecs": _pad_to(
            jnp.concatenate(
                [zeros(hid_pad), ones_row(hidden, hid_pad), zeros(hid_pad)],
                axis=0),
            (8, hid_pad)),
        # decoder embeddings (f32; padded hidden columns are zero)
        "wte": _pad_to(jax.random.normal(keys[4], (vocab, hidden), jnp.float32) * s,
                       (vocab, hid_pad)),
        "wpe": _pad_to(jax.random.normal(keys[5], (max_pos, hidden), jnp.float32) * s,
                       (max_pos, hid_pad)),
        # decoder stub: lm head
        "head_w": w(keys[6], hidden, vocab, (hid_pad, voc_pad)),
        "head_b": jnp.zeros((1, voc_pad), jnp.float32),
        # real (unpadded) dims for LN statistics and output slicing
        "dims": {"compressed": compressed_dim, "hidden": hidden,
                 "vocab": vocab, "visual": visual_dim},
    }


if __name__ == "__main__":
    # small shapes: batch=2, image [2,4,16,16], visual_dim=256 (stands in for
    # 2048), compressed_dim=64 (for 512), decoder hidden=32, vocab=100, seq=8.
    B, C, Hs, Ws = 2, 4, 16, 16
    visual_dim, compressed_dim, hidden, vocab, seq = 256, 64, 32, 100, 8

    key = jax.random.PRNGKey(0)
    k_img, k_txt, k_par = jax.random.split(key, 3)

    image = jax.random.normal(k_img, (B, C, Hs, Ws), jnp.float32)  # NCHW
    text = jax.random.randint(k_txt, (B, seq), 0, vocab, jnp.int32)
    params = make_params(k_par, C * Hs * Ws, visual_dim, compressed_dim,
                         hidden, vocab, max_pos=seq + 1)

    out = robust_vlm_forward(params, image, text)
    jax.block_until_ready(out)

    assert out["logits"].shape == (B, seq + 1, vocab)
    assert out["visual_embeddings"].shape == (B, hidden)
    assert bool(jnp.all(jnp.isfinite(out["logits"])))
    assert bool(jnp.all(jnp.isfinite(out["visual_embeddings"])))
    print("KERNEL_OK")
</pallas_src>

<mosaic_0001>
module attributes {stable_mosaic.version = 11 : i64} {
  func.func @_robust_vlm_kernel(%arg0: memref<2x1024xbf16, #tpu.memory_space<vmem>>, %arg1: memref<1024x256xbf16, #tpu.memory_space<vmem>>, %arg2: memref<4x256xf32, #tpu.memory_space<vmem>>, %arg3: memref<256x128xbf16, #tpu.memory_space<vmem>>, %arg4: memref<3x128xf32, #tpu.memory_space<vmem>>, %arg5: memref<128x256xbf16, #tpu.memory_space<vmem>>, %arg6: memref<256x128xbf16, #tpu.memory_space<vmem>>, %arg7: memref<24x128xf32, #tpu.memory_space<vmem>>, %arg8: memref<2x16x128xbf16, #tpu.memory_space<vmem>>, %arg9: memref<128x128xbf16, #tpu.memory_space<vmem>>, %arg10: memref<1x128xf32, #tpu.memory_space<vmem>>, %arg11: memref<2x128xf32, #tpu.memory_space<vmem>>, %arg12: memref<32x128xf32, #tpu.memory_space<vmem>>) attributes {dimension_semantics = [], scalar_prefetch = 0 : i64, scratch_operands = 0 : i64, tpu.core_type = #tpu.core_type<tc>} {
    %c0 = arith.constant 0 : index
    %c0_0 = arith.constant 0 : index
    %0 = vector.load %arg2[%c0, %c0_0] : memref<4x256xf32, #tpu.memory_space<vmem>>, vector<4x256xf32>
    %1 = vector.extract_strided_slice %0 {offsets = [0, 0], sizes = [1, 256], strides = [1, 1]} : vector<4x256xf32> to vector<1x256xf32>
    %2 = vector.extract_strided_slice %0 {offsets = [1, 0], sizes = [1, 256], strides = [1, 1]} : vector<4x256xf32> to vector<1x256xf32>
    %3 = vector.extract_strided_slice %0 {offsets = [2, 0], sizes = [1, 256], strides = [1, 1]} : vector<4x256xf32> to vector<1x256xf32>
    %4 = vector.extract_strided_slice %0 {offsets = [3, 0], sizes = [1, 256], strides = [1, 1]} : vector<4x256xf32> to vector<1x256xf32>
    %c0_1 = arith.constant 0 : index
    %c0_2 = arith.constant 0 : index
    %5 = vector.load %arg4[%c0_1, %c0_2] : memref<3x128xf32, #tpu.memory_space<vmem>>, vector<3x128xf32>
    %6 = vector.extract_strided_slice %5 {offsets = [0, 0], sizes = [1, 128], strides = [1, 1]} : vector<3x128xf32> to vector<1x128xf32>
    %7 = vector.extract_strided_slice %5 {offsets = [1, 0], sizes = [1, 128], strides = [1, 1]} : vector<3x128xf32> to vector<1x128xf32>
    %8 = vector.extract_strided_slice %5 {offsets = [2, 0], sizes = [1, 128], strides = [1, 1]} : vector<3x128xf32> to vector<1x128xf32>
    %c0_3 = arith.constant 0 : index
    %c0_4 = arith.constant 0 : index
    %9 = vector.load %arg7[%c0_3, %c0_4] : memref<24x128xf32, #tpu.memory_space<vmem>>, vector<24x128xf32>
    %10 = vector.extract_strided_slice %9 {offsets = [0, 0], sizes = [1, 128], strides = [1, 1]} : vector<24x128xf32> to vector<1x128xf32>
    %11 = vector.extract_strided_slice %9 {offsets = [1, 0], sizes = [1, 128], strides = [1, 1]} : vector<24x128xf32> to vector<1x128xf32>
    %12 = vector.extract_strided_slice %9 {offsets = [2, 0], sizes = [1, 128], strides = [1, 1]} : vector<24x128xf32> to vector<1x128xf32>
    %13 = vector.extract_strided_slice %9 {offsets = [8, 0], sizes = [16, 128], strides = [1, 1]} : vector<24x128xf32> to vector<16x128xf32>
    %c0_5 = arith.constant 0 : index
    %c0_6 = arith.constant 0 : index
    %14 = vector.load %arg0[%c0_5, %c0_6] : memref<2x1024xbf16, #tpu.memory_space<vmem>>, vector<2x1024xbf16>
    %c0_7 = arith.constant 0 : index
    %c0_8 = arith.constant 0 : index
    %15 = vector.load %arg1[%c0_7, %c0_8] : memref<1024x256xbf16, #tpu.memory_space<vmem>>, vector<1024x256xbf16>
    %cst = arith.constant dense<0.000000e+00> : vector<2x256xf32>
    %16 = tpu.matmul %14, %15, %cst {dimension_numbers = #tpu.dot_dimension_numbers<[1], [0], [0], [1], [0, 0, 1, 1], [], []>} : vector<2x1024xbf16>, vector<1024x256xbf16>, vector<2x256xf32> -> vector<2x256xf32>
    %17 = vector.broadcast %1 : vector<1x256xf32> to vector<2x256xf32>
    %18 = arith.addf %16, %17 : vector<2x256xf32>
    %19 = arith.truncf %18 : vector<2x256xf32> to vector<2x256xbf16>
    %c0_9 = arith.constant 0 : index
    %c0_10 = arith.constant 0 : index
    %20 = vector.load %arg3[%c0_9, %c0_10] : memref<256x128xbf16, #tpu.memory_space<vmem>>, vector<256x128xbf16>
    %cst_11 = arith.constant dense<0.000000e+00> : vector<2x128xf32>
    %21 = tpu.matmul %19, %20, %cst_11 {dimension_numbers = #tpu.dot_dimension_numbers<[1], [0], [0], [1], [0, 0, 1, 1], [], []>} : vector<2x256xbf16>, vector<256x128xbf16>, vector<2x128xf32> -> vector<2x128xf32>
    %22 = vector.broadcast %6 : vector<1x128xf32> to vector<2x128xf32>
    %23 = arith.addf %21, %22 : vector<2x128xf32>
    %cst_12 = arith.constant 0.000000e+00 : f32
    %24 = vector.broadcast %cst_12 : f32 to vector<2x128xf32>
    %25 = arith.maximumf %23, %24 : vector<2x128xf32>
    %cst_13 = arith.constant dense<0.000000e+00> : vector<2xf32>
    %26 = vector.multi_reduction <add>, %25, %cst_13 [1] : vector<2x128xf32> to vector<2xf32>
    %27 = vector.shape_cast %26 : vector<2xf32> to vector<2x1xf32>
    %cst_14 = arith.constant 1.562500e-02 : f32
    %28 = vector.broadcast %cst_14 : f32 to vector<2x1xf32>
    %29 = arith.mulf %27, %28 : vector<2x1xf32>
    %30 = vector.broadcast %29 : vector<2x1xf32> to vector<2x128xf32>
    %31 = arith.subf %25, %30 : vector<2x128xf32>
    %32 = arith.mulf %31, %31 : vector<2x128xf32>
    %cst_15 = arith.constant dense<0.000000e+00> : vector<2xf32>
    %33 = vector.multi_reduction <add>, %32, %cst_15 [1] : vector<2x128xf32> to vector<2xf32>
    %34 = vector.shape_cast %33 : vector<2xf32> to vector<2x1xf32>
    %35 = arith.mulf %29, %29 : vector<2x1xf32>
    %cst_16 = arith.constant 6.400000e+01 : f32
    %36 = vector.broadcast %cst_16 : f32 to vector<2x1xf32>
    %37 = arith.mulf %36, %35 : vector<2x1xf32>
    %38 = arith.subf %34, %37 : vector<2x1xf32>
    %cst_17 = arith.constant 1.562500e-02 : f32
    %39 = vector.broadcast %cst_17 : f32 to vector<2x1xf32>
    %40 = arith.mulf %38, %39 : vector<2x1xf32>
    %cst_18 = arith.constant 9.99999974E-6 : f32
    %41 = vector.broadcast %cst_18 : f32 to vector<2x1xf32>
    %42 = arith.addf %40, %41 : vector<2x1xf32>
    %43 = math.rsqrt %42 : vector<2x1xf32>
    %44 = vector.broadcast %43 : vector<2x1xf32> to vector<2x128xf32>
    %45 = arith.mulf %31, %44 : vector<2x128xf32>
    %46 = vector.broadcast %7 : vector<1x128xf32> to vector<2x128xf32>
    %47 = arith.mulf %45, %46 : vector<2x128xf32>
    %48 = vector.broadcast %8 : vector<1x128xf32> to vector<2x128xf32>
    %49 = arith.addf %47, %48 : vector<2x128xf32>
    %50 = arith.truncf %49 : vector<2x128xf32> to vector<2x128xbf16>
    %c0_19 = arith.constant 0 : index
    %c0_20 = arith.constant 0 : index
    %51 = vector.load %arg5[%c0_19, %c0_20] : memref<128x256xbf16, #tpu.memory_space<vmem>>, vector<128x256xbf16>
    %cst_21 = arith.constant dense<0.000000e+00> : vector<2x256xf32>
    %52 = tpu.matmul %50, %51, %cst_21 {dimension_numbers = #tpu.dot_dimension_numbers<[1], [0], [0], [1], [0, 0, 1, 1], [], []>} : vector<2x128xbf16>, vector<128x256xbf16>, vector<2x256xf32> -> vector<2x256xf32>
    %53 = vector.broadcast %2 : vector<1x256xf32> to vector<2x256xf32>
    %54 = arith.addf %52, %53 : vector<2x256xf32>
    %cst_22 = arith.constant 0.000000e+00 : f32
    %55 = vector.broadcast %cst_22 : f32 to vector<2x256xf32>
    %56 = arith.maximumf %54, %55 : vector<2x256xf32>
    %cst_23 = arith.constant dense<0.000000e+00> : vector<2xf32>
    %57 = vector.multi_reduction <add>, %56, %cst_23 [1] : vector<2x256xf32> to vector<2xf32>
    %58 = vector.shape_cast %57 : vector<2xf32> to vector<2x1xf32>
    %cst_24 = arith.constant 3.906250e-03 : f32
    %59 = vector.broadcast %cst_24 : f32 to vector<2x1xf32>
    %60 = arith.mulf %58, %59 : vector<2x1xf32>
    %61 = vector.broadcast %60 : vector<2x1xf32> to vector<2x256xf32>
    %62 = arith.subf %56, %61 : vector<2x256xf32>
    %63 = arith.mulf %62, %62 : vector<2x256xf32>
    %cst_25 = arith.constant dense<0.000000e+00> : vector<2xf32>
    %64 = vector.multi_reduction <add>, %63, %cst_25 [1] : vector<2x256xf32> to vector<2xf32>
    %65 = vector.shape_cast %64 : vector<2xf32> to vector<2x1xf32>
    %cst_26 = arith.constant 3.906250e-03 : f32
    %66 = vector.broadcast %cst_26 : f32 to vector<2x1xf32>
    %67 = arith.mulf %65, %66 : vector<2x1xf32>
    %cst_27 = arith.constant 9.99999974E-6 : f32
    %68 = vector.broadcast %cst_27 : f32 to vector<2x1xf32>
    %69 = arith.addf %67, %68 : vector<2x1xf32>
    %70 = math.rsqrt %69 : vector<2x1xf32>
    %71 = vector.broadcast %70 : vector<2x1xf32> to vector<2x256xf32>
    %72 = arith.mulf %62, %71 : vector<2x256xf32>
    %73 = vector.broadcast %3 : vector<1x256xf32> to vector<2x256xf32>
    %74 = arith.mulf %72, %73 : vector<2x256xf32>
    %75 = vector.broadcast %4 : vector<1x256xf32> to vector<2x256xf32>
    %76 = arith.addf %74, %75 : vector<2x256xf32>
    %77 = arith.truncf %76 : vector<2x256xf32> to vector<2x256xbf16>
    %c0_28 = arith.constant 0 : index
    %c0_29 = arith.constant 0 : index
    %78 = vector.load %arg6[%c0_28, %c0_29] : memref<256x128xbf16, #tpu.memory_space<vmem>>, vector<256x128xbf16>
    %cst_30 = arith.constant dense<0.000000e+00> : vector<2x128xf32>
    %79 = tpu.matmul %77, %78, %cst_30 {dimension_numbers = #tpu.dot_dimension_numbers<[1], [0], [0], [1], [0, 0, 1, 1], [], []>} : vector<2x256xbf16>, vector<256x128xbf16>, vector<2x128xf32> -> vector<2x128xf32>
    %80 = vector.broadcast %10 : vector<1x128xf32> to vector<2x128xf32>
    %81 = arith.addf %79, %80 : vector<2x128xf32>
    %c0_31 = arith.constant 0 : index
    %c0_32 = arith.constant 0 : index
    %82 = vector.load %arg11[%c0_31, %c0_32] : memref<2x128xf32, #tpu.memory_space<vmem>>, vector<2x128xf32>
    tpu.vector_store %arg11[%c0_31, %c0_32], %81 {strides = array<i32>} : memref<2x128xf32, #tpu.memory_space<vmem>>, vector<2x128xf32>,
    %c0_33 = arith.constant 0 : index
    %c0_34 = arith.constant 0 : index
    %c0_35 = arith.constant 0 : index
    %83 = vector.load %arg8[%c0_33, %c0_34, %c0_35] : memref<2x16x128xbf16, #tpu.memory_space<vmem>>, vector<2x16x128xbf16>
    %84 = arith.extf %83 : vector<2x16x128xbf16> to vector<2x16x128xf32>
    %85 = tpu.iota {dimensions = array<i32: 1>} : vector<2x16x128xi32>
    %c0_i32 = arith.constant 0 : i32
    %86 = vector.broadcast %c0_i32 : i32 to vector<2x16x128xi32>
    %87 = arith.cmpi eq, %85, %86 : vector<2x16x128xi32>
    %88 = vector.shape_cast %81 : vector<2x128xf32> to vector<2x1x128xf32>
    %89 = vector.shape_cast %88 : vector<2x1x128xf32> to vector<2x1x128xf32>
    %90 = vector.broadcast %89 : vector<2x1x128xf32> to vector<2x16x128xf32>
    %91 = arith.select %87, %90, %84 : vector<2x16x128xi1>, vector<2x16x128xf32>
    %92 = vector.shape_cast %13 : vector<16x128xf32> to vector<1x16x128xf32>
    %93 = vector.broadcast %92 : vector<1x16x128xf32> to vector<2x16x128xf32>
    %94 = arith.addf %91, %93 : vector<2x16x128xf32>
    %cst_36 = arith.constant dense<0.000000e+00> : vector<2x16xf32>
    %95 = vector.multi_reduction <add>, %94, %cst_36 [2] : vector<2x16x128xf32> to vector<2x16xf32>
    %96 = vector.shape_cast %95 : vector<2x16xf32> to vector<2x16x1xf32>
    %cst_37 = arith.constant 3.125000e-02 : f32
    %97 = vector.broadcast %cst_37 : f32 to vector<2x16x1xf32>
    %98 = arith.mulf %96, %97 : vector<2x16x1xf32>
    %99 = vector.broadcast %98 : vector<2x16x1xf32> to vector<2x16x128xf32>
    %100 = arith.subf %94, %99 : vector<2x16x128xf32>
    %101 = arith.mulf %100, %100 : vector<2x16x128xf32>
    %cst_38 = arith.constant dense<0.000000e+00> : vector<2x16xf32>
    %102 = vector.multi_reduction <add>, %101, %cst_38 [2] : vector<2x16x128xf32> to vector<2x16xf32>
    %103 = vector.shape_cast %102 : vector<2x16xf32> to vector<2x16x1xf32>
    %104 = arith.mulf %98, %98 : vector<2x16x1xf32>
    %cst_39 = arith.constant 9.600000e+01 : f32
    %105 = vector.broadcast %cst_39 : f32 to vector<2x16x1xf32>
    %106 = arith.mulf %105, %104 : vector<2x16x1xf32>
    %107 = arith.subf %103, %106 : vector<2x16x1xf32>
    %cst_40 = arith.constant 3.125000e-02 : f32
    %108 = vector.broadcast %cst_40 : f32 to vector<2x16x1xf32>
    %109 = arith.mulf %107, %108 : vector<2x16x1xf32>
    %cst_41 = arith.constant 9.99999974E-6 : f32
    %110 = vector.broadcast %cst_41 : f32 to vector<2x16x1xf32>
    %111 = arith.addf %109, %110 : vector<2x16x1xf32>
    %112 = math.rsqrt %111 : vector<2x16x1xf32>
    %113 = vector.broadcast %112 : vector<2x16x1xf32> to vector<2x16x128xf32>
    %114 = arith.mulf %100, %113 : vector<2x16x128xf32>
    %115 = vector.shape_cast %11 : vector<1x128xf32> to vector<1x1x128xf32>
    %116 = vector.broadcast %115 : vector<1x1x128xf32> to vector<2x16x128xf32>
    %117 = arith.mulf %114, %116 : vector<2x16x128xf32>
    %118 = vector.shape_cast %12 : vector<1x128xf32> to vector<1x1x128xf32>
    %119 = vector.broadcast %118 : vector<1x1x128xf32> to vector<2x16x128xf32>
    %120 = arith.addf %117, %119 : vector<2x16x128xf32>
    %121 = vector.shape_cast %120 : vector<2x16x128xf32> to vector<32x128xf32>
    %122 = arith.truncf %121 : vector<32x128xf32> to vector<32x128xbf16>
    %c0_42 = arith.constant 0 : index
    %c0_43 = arith.constant 0 : index
    %123 = vector.load %arg9[%c0_42, %c0_43] : memref<128x128xbf16, #tpu.memory_space<vmem>>, vector<128x128xbf16>
    %cst_44 = arith.constant dense<0.000000e+00> : vector<32x128xf32>
    %124 = tpu.matmul %122, %123, %cst_44 {dimension_numbers = #tpu.dot_dimension_numbers<[1], [0], [0], [1], [0, 0, 1, 1], [], []>} : vector<32x128xbf16>, vector<128x128xbf16>, vector<32x128xf32> -> vector<32x128xf32>
    %c0_45 = arith.constant 0 : index
    %c0_46 = arith.constant 0 : index
    %125 = vector.load %arg10[%c0_45, %c0_46] : memref<1x128xf32, #tpu.memory_space<vmem>>, vector<1x128xf32>
    %126 = vector.broadcast %125 : vector<1x128xf32> to vector<32x128xf32>
    %127 = arith.addf %124, %126 : vector<32x128xf32>
    %c0_47 = arith.constant 0 : index
    %c0_48 = arith.constant 0 : index
    %128 = vector.load %arg12[%c0_47, %c0_48] : memref<32x128xf32, #tpu.memory_space<vmem>>, vector<32x128xf32>
    tpu.vector_store %arg12[%c0_47, %c0_48], %127 {strides = array<i32>} : memref<32x128xf32, #tpu.memory_space<vmem>>, vector<32x128xf32>,
    return
  }
}

</mosaic_0001>

<llo_original>
// kernel: tpu_custom_call.1
$region0: #{tpu_custom_call.1}
  #allocation0 [shape = 'u32[]', space=smem, size = 0x4, offset = 0x4, fixed_abs, tag = 'smem constant byte address 0x4 - core index']
  #allocation1 [shape = 'u32[144,128]{1,0:T(1,128)}', space=vmem, size = 0x12000, scoped, tag = 'internal scratch']
  %s0 = inlined_call_operand.hbm [shape: bf16[2,1024], index: 0, kind: input, shape index: {}]
  %s1 = inlined_call_operand.hbm [shape: bf16[1024,256], index: 1, kind: input, shape index: {}]
  %s2 = inlined_call_operand.hbm [shape: f32[4,256], index: 2, kind: input, shape index: {}]
  %s3 = inlined_call_operand.hbm [shape: bf16[256,128], index: 3, kind: input, shape index: {}]
  %s4 = inlined_call_operand.hbm [shape: f32[3,128], index: 4, kind: input, shape index: {}]
  %s5 = inlined_call_operand.hbm [shape: bf16[128,256], index: 5, kind: input, shape index: {}]
  %s6 = inlined_call_operand.hbm [shape: bf16[256,128], index: 6, kind: input, shape index: {}]
  %s7 = inlined_call_operand.vmem [shape: f32[24,128], index: 7, kind: input, shape index: {}]
  %s8 = inlined_call_operand.hbm [shape: bf16[2,16,128], index: 8, kind: input, shape index: {}]
  %s9 = inlined_call_operand.hbm [shape: bf16[128,128], index: 9, kind: input, shape index: {}]
  %s10 = inlined_call_operand.vmem [shape: f32[1,128], index: 10, kind: input, shape index: {}]
  %s11 = inlined_call_operand.hbm [shape: f32[2,128], index: 11, kind: output, shape index: {0}]
  %s12 = inlined_call_operand.hbm [shape: f32[32,128], index: 12, kind: output, shape index: {1}]
  %13 = xla_tuple %s11, %s12
  %s14 = sld [smem:[#allocation0]]
  $region98: #{tpu_custom_call.1} parent=0
    _
  %s16 = ssub.s32 1, %s14
  %s17 = scalar_select 0, %s16, %s14
  $region1: #{tpu_custom_call.1} parent=0
    #allocation2 [shape = 'u8[4096]{0}', space=vmem, size = 0x1000, scoped, tag = 'input window, operand 0, single buffered']
    #allocation3 [shape = 's32[1]{0}', space=sflag, size = 0x4, scoped, tag = 'scoped memory for tpu_custom_call.1']
    #allocation4 [shape = 's32[1]{0}', space=sflag, size = 0x4, scoped, tag = 'scoped memory for tpu_custom_call.1']
    #allocation5 [shape = 'u8[524288]{0}', space=vmem, size = 0x80000, scoped, tag = 'input window, operand 1, single buffered']
    #allocation6 [shape = 's32[1]{0}', space=sflag, size = 0x4, scoped, tag = 'scoped memory for tpu_custom_call.1']
    #allocation7 [shape = 'u8[4096]{0}', space=vmem, size = 0x1000, scoped, tag = 'input window, operand 2, single buffered']
    #allocation8 [shape = 'u8[65536]{0}', space=vmem, size = 0x10000, scoped, tag = 'input window, operand 3, single buffered']
    #allocation9 [shape = 's32[1]{0}', space=sflag, size = 0x4, scoped, tag = 'scoped memory for tpu_custom_call.1']
    #allocation10 [shape = 'u8[2048]{0}', space=vmem, size = 0x800, scoped, tag = 'input window, operand 4, single buffered']
    #allocation11 [shape = 'u8[65536]{0}', space=vmem, size = 0x10000, scoped, tag = 'input window, operand 5, single buffered']
    #allocation12 [shape = 's32[1]{0}', space=sflag, size = 0x4, scoped, tag = 'scoped memory for tpu_custom_call.1']
    #allocation13 [shape = 'u8[65536]{0}', space=vmem, size = 0x10000, scoped, tag = 'input window, operand 6, single buffered']
    #allocation14 [shape = 'u8[8192]{0}', space=vmem, size = 0x2000, scoped, tag = 'input window, operand 8, single buffered']
    #allocation15 [shape = 's32[1]{0}', space=sflag, size = 0x4, scoped, tag = 'scoped memory for tpu_custom_call.1']
    #allocation16 [shape = 'u8[32768]{0}', space=vmem, size = 0x8000, scoped, tag = 'input window, operand 9, single buffered']
    #allocation17 [shape = 'u8[1024]{0}', space=vmem, size = 0x400, scoped, tag = 'output window, operand 0, single buffered']
    #allocation18 [shape = 'u8[16384]{0}', space=vmem, size = 0x4000, scoped, tag = 'output window, operand 1, single buffered']
    #allocation19 [shape = 's32[1]{0}', space=sflag, size = 0x4, scoped, tag = 'scoped memory for tpu_custom_call.1']
    %18 = vsyncpa [#allocation3], 0
    %19 = vsyncpa [#allocation6], 0
    %20 = vsyncpa [#allocation9], 0
    %21 = vsyncpa [#allocation12], 0
    %22 = vsyncpa [#allocation15], 0
    %23 = vsyncpa [#allocation4], 0
    %24 = vsyncpa [#allocation19], 0
    // Predicated region
    $region2: #{tpu_custom_call.1} parent=1 // pred_check
      _
    $region3: #{tpu_custom_call.1} parent=1 // pred_check_branch
      %26 = sbr.rel (0) target = $region5
    $region4: #{tpu_custom_call.1} parent=1 // pred_region
      %s28 = ssub.s32 128, 128
      %29 = vsyncadd [#allocation3], %s28
      %s31 = sshll.u32 [#allocation2], 4
      %s32 = int_to_ptr.vmem [resolvable:$true] %s31
      %34 = dma.hbm_to_vmem [thread:$0]  %s0, 128, %s32, [#allocation3]
    $region5: #{tpu_custom_call.1} parent=1 // pred_fallthru
      _
    // Predicated region
    $region6: #{tpu_custom_call.1} parent=1 // pred_check
      _
    $region7: #{tpu_custom_call.1} parent=1 // pred_check_branch
      %36 = sbr.rel (0) target = $region9
    $region8: #{tpu_custom_call.1} parent=1 // pred_region
      %s38 = ssub.s32 16384, 16384
      %39 = vsyncadd [#allocation6], %s38
      %s40 = sshll.u32 [#allocation5], 4
      %s41 = int_to_ptr.vmem [resolvable:$true] %s40
      %46 = dma.hbm_to_vmem [thread:$0]  %s1, 16384, %s41, [#allocation6], 128, 128, 8
    $region9: #{tpu_custom_call.1} parent=1 // pred_fallthru
      _
    // Predicated region
    $region10: #{tpu_custom_call.1} parent=1 // pred_check
      _
    $region11: #{tpu_custom_call.1} parent=1 // pred_check_branch
      %48 = sbr.rel (0) target = $region13
    $region12: #{tpu_custom_call.1} parent=1 // pred_region
      %s50 = ssub.s32 128, 128
      %51 = vsyncadd [#allocation6], %s50
      %s53 = sshll.u32 [#allocation7], 4
      %s54 = int_to_ptr.vmem [resolvable:$true] %s53
      %56 = dma.hbm_to_vmem [thread:$0]  %s2, 128, %s54, [#allocation6]
    $region13: #{tpu_custom_call.1} parent=1 // pred_fallthru
      _
    // Predicated region
    $region14: #{tpu_custom_call.1} parent=1 // pred_check
      _
    $region15: #{tpu_custom_call.1} parent=1 // pred_check_branch
      %58 = sbr.rel (0) target = $region17
    $region16: #{tpu_custom_call.1} parent=1 // pred_region
      %s60 = ssub.s32 2048, 2048
      %61 = vsyncadd [#allocation9], %s60
      %s62 = sshll.u32 [#allocation8], 4
      %s63 = int_to_ptr.vmem [resolvable:$true] %s62
      %68 = dma.hbm_to_vmem [thread:$0]  %s3, 2048, %s63, [#allocation9], 64, 64, 4
    $region17: #{tpu_custom_call.1} parent=1 // pred_fallthru
      _
    // Predicated region
    $region18: #{tpu_custom_call.1} parent=1 // pred_check
      _
    $region19: #{tpu_custom_call.1} parent=1 // pred_check_branch
      %70 = sbr.rel (0) target = $region21
    $region20: #{tpu_custom_call.1} parent=1 // pred_region
      %s72 = ssub.s32 64, 64
      %73 = vsyncadd [#allocation9], %s72
      %s75 = sshll.u32 [#allocation10], 4
      %s76 = int_to_ptr.vmem [resolvable:$true] %s75
      %78 = dma.hbm_to_vmem [thread:$0]  %s4, 64, %s76, [#allocation9]
    $region21: #{tpu_custom_call.1} parent=1 // pred_fallthru
      _
    // Predicated region
    $region22: #{tpu_custom_call.1} parent=1 // pred_check
      _
    $region23: #{tpu_custom_call.1} parent=1 // pred_check_branch
      %80 = sbr.rel (0) target = $region25
    $region24: #{tpu_custom_call.1} parent=1 // pred_region
      %s82 = ssub.s32 2048, 2048
      %83 = vsyncadd [#allocation12], %s82
      %s84 = sshll.u32 [#allocation11], 4
      %s85 = int_to_ptr.vmem [resolvable:$true] %s84
      %90 = dma.hbm_to_vmem [thread:$0]  %s5, 2048, %s85, [#allocation12], 128, 128, 8
    $region25: #{tpu_custom_call.1} parent=1 // pred_fallthru
      _
    // Predicated region
    $region26: #{tpu_custom_call.1} parent=1 // pred_check
      _
    $region27: #{tpu_custom_call.1} parent=1 // pred_check_branch
      %92 = sbr.rel (0) target = $region29
    $region28: #{tpu_custom_call.1} parent=1 // pred_region
      %s94 = ssub.s32 2048, 2048
      %95 = vsyncadd [#allocation12], %s94
      %s96 = sshll.u32 [#allocation13], 4
      %s97 = int_to_ptr.vmem [resolvable:$true] %s96
      %102 = dma.hbm_to_vmem [thread:$0]  %s6, 2048, %s97, [#allocation12], 64, 64, 4
    $region29: #{tpu_custom_call.1} parent=1 // pred_fallthru
      _
    // Predicated region
    $region30: #{tpu_custom_call.1} parent=1 // pred_check
      _
    $region31: #{tpu_custom_call.1} parent=1 // pred_check_branch
      %104 = sbr.rel (0) target = $region33
    $region32: #{tpu_custom_call.1} parent=1 // pred_region
      _
    $region33: #{tpu_custom_call.1} parent=1 // pred_fallthru
      _
    // Predicated region
    $region34: #{tpu_custom_call.1} parent=1 // pred_check
      _
    $region35: #{tpu_custom_call.1} parent=1 // pred_check_branch
      %106 = sbr.rel (0) target = $region37
    $region36: #{tpu_custom_call.1} parent=1 // pred_region
      %s108 = ssub.s32 256, 256
      %109 = vsyncadd [#allocation15], %s108
      %s110 = sshll.u32 [#allocation14], 4
      %s111 = int_to_ptr.vmem [resolvable:$true] %s110
      %116 = dma.hbm_to_vmem [thread:$0]  %s8, 256, %s111, [#allocation15], 64, 64, 4
    $region37: #{tpu_custom_call.1} parent=1 // pred_fallthru
      _
    // Predicated region
    $region38: #{tpu_custom_call.1} parent=1 // pred_check
      _
    $region39: #{tpu_custom_call.1} parent=1 // pred_check_branch
      %118 = sbr.rel (0) target = $region41
    $region40: #{tpu_custom_call.1} parent=1 // pred_region
      %s120 = ssub.s32 1024, 1024
      %121 = vsyncadd [#allocation15], %s120
      %s122 = sshll.u32 [#allocation16], 4
      %s123 = int_to_ptr.vmem [resolvable:$true] %s122
      %128 = dma.hbm_to_vmem [thread:$0]  %s9, 1024, %s123, [#allocation15], 64, 64, 4
    $region41: #{tpu_custom_call.1} parent=1 // pred_fallthru
      _
    // Predicated region
    $region42: #{tpu_custom_call.1} parent=1 // pred_check
      _
    $region43: #{tpu_custom_call.1} parent=1 // pred_check_branch
      %130 = sbr.rel (0) target = $region45
    $region44: #{tpu_custom_call.1} parent=1 // pred_region
      _
    $region45: #{tpu_custom_call.1} parent=1 // pred_fallthru
      _
    // Predicated region
    $region46: #{tpu_custom_call.1} parent=1 // pred_check
      _
    $region47: #{tpu_custom_call.1} parent=1 // pred_check_branch
      %132 = sbr.rel (0) target = $region49
    $region48: #{tpu_custom_call.1} parent=1 // pred_region
      %133 = dma.done [#allocation3], 128
    $region49: #{tpu_custom_call.1} parent=1 // pred_fallthru
      _
    // Predicated region
    $region50: #{tpu_custom_call.1} parent=1 // pred_check
      _
    $region51: #{tpu_custom_call.1} parent=1 // pred_check_branch
      %135 = sbr.rel (0) target = $region53
    $region52: #{tpu_custom_call.1} parent=1 // pred_region
      %136 = dma.done [#allocation6], 16384
    $region53: #{tpu_custom_call.1} parent=1 // pred_fallthru
      _
    // Predicated region
    $region54: #{tpu_custom_call.1} parent=1 // pred_check
      _
    $region55: #{tpu_custom_call.1} parent=1 // pred_check_branch
      %138 = sbr.rel (0) target = $region57
    $region56: #{tpu_custom_call.1} parent=1 // pred_region
      %139 = dma.done [#allocation6], 128
    $region57: #{tpu_custom_call.1} parent=1 // pred_fallthru
      _
    // Predicated region
    $region58: #{tpu_custom_call.1} parent=1 // pred_check
      _
    $region59: #{tpu_custom_call.1} parent=1 // pred_check_branch
      %141 = sbr.rel (0) target = $region61
    $region60: #{tpu_custom_call.1} parent=1 // pred_region
      %142 = dma.done [#allocation9], 2048
    $region61: #{tpu_custom_call.1} parent=1 // pred_fallthru
      _
    // Predicated region
    $region62: #{tpu_custom_call.1} parent=1 // pred_check
      _
    $region63: #{tpu_custom_call.1} parent=1 // pred_check_branch
      %144 = sbr.rel (0) target = $region65
    $region64: #{tpu_custom_call.1} parent=1 // pred_region
      %145 = dma.done [#allocation9], 64
    $region65: #{tpu_custom_call.1} parent=1 // pred_fallthru
      _
    // Predicated region
    $region66: #{tpu_custom_call.1} parent=1 // pred_check
      _
    $region67: #{tpu_custom_call.1} parent=1 // pred_check_branch
      %147 = sbr.rel (0) target = $region69
    $region68: #{tpu_custom_call.1} parent=1 // pred_region
      %148 = dma.done [#allocation12], 2048
    $region69: #{tpu_custom_call.1} parent=1 // pred_fallthru
      _
    // Predicated region
    $region70: #{tpu_custom_call.1} parent=1 // pred_check
      _
    $region71: #{tpu_custom_call.1} parent=1 // pred_check_branch
      %150 = sbr.rel (0) target = $region73
    $region72: #{tpu_custom_call.1} parent=1 // pred_region
      %151 = dma.done [#allocation12], 2048
    $region73: #{tpu_custom_call.1} parent=1 // pred_fallthru
      _
    // Predicated region
    $region74: #{tpu_custom_call.1} parent=1 // pred_check
      _
    $region75: #{tpu_custom_call.1} parent=1 // pred_check_branch
      %153 = sbr.rel (0) target = $region77
    $region76: #{tpu_custom_call.1} parent=1 // pred_region
      %154 = dma.done [#allocation15], 256
    $region77: #{tpu_custom_call.1} parent=1 // pred_fallthru
      _
    // Predicated region
    $region78: #{tpu_custom_call.1} parent=1 // pred_check
      _
    $region79: #{tpu_custom_call.1} parent=1 // pred_check_branch
      %156 = sbr.rel (0) target = $region81
    $region80: #{tpu_custom_call.1} parent=1 // pred_region
      %157 = dma.done [#allocation15], 1024
    $region81: #{tpu_custom_call.1} parent=1 // pred_fallthru
      _
    %v159 = vld [vmem:[#allocation7] sm:$0xff]
    %v160 = vld [vmem:[#allocation10] sm:$0x7]
    %v161 = vld [vmem:[%s7] sm:$0xff]
    %v162 = vld [vmem:[%s7 + $0x8] sm:$0xff]
    %v163 = vld [vmem:[%s7 + $0x10] sm:$0xff]
    %v164 = vld [vmem:[#allocation2] sm:$0xff]
    %v165 = vld [vmem:[#allocation5] sm:$0xff]
    %v166 = vld [vmem:[#allocation5 + $0x8] sm:$0xff]
    %v167 = vld [vmem:[#allocation5 + $0x10] sm:$0xff]
    %v168 = vld [vmem:[#allocation5 + $0x18] sm:$0xff]
    %v169 = vld [vmem:[#allocation5 + $0x20] sm:$0xff]
    %v170 = vld [vmem:[#allocation5 + $0x28] sm:$0xff]
    %v171 = vld [vmem:[#allocation5 + $0x30] sm:$0xff]
    %v172 = vld [vmem:[#allocation5 + $0x38] sm:$0xff]
    %v173 = vld [vmem:[#allocation5 + $0x40] sm:$0xff]
    %v174 = vld [vmem:[#allocation5 + $0x48] sm:$0xff]
    %v175 = vld [vmem:[#allocation5 + $0x50] sm:$0xff]
    %v176 = vld [vmem:[#allocation5 + $0x58] sm:$0xff]
    %v177 = vld [vmem:[#allocation5 + $0x60] sm:$0xff]
    %v178 = vld [vmem:[#allocation5 + $0x68] sm:$0xff]
    %v179 = vld [vmem:[#allocation5 + $0x70] sm:$0xff]
    %v180 = vld [vmem:[#allocation5 + $0x78] sm:$0xff]
    %v181 = vld [vmem:[#allocation5 + $0x80] sm:$0xff]
    %v182 = vld [vmem:[#allocation5 + $0x88] sm:$0xff]
    %v183 = vld [vmem:[#allocation5 + $0x90] sm:$0xff]
    %v184 = vld [vmem:[#allocation5 + $0x98] sm:$0xff]
    %v185 = vld [vmem:[#allocation5 + $0xa0] sm:$0xff]
    %v186 = vld [vmem:[#allocation5 + $0xa8] sm:$0xff]
    %v187 = vld [vmem:[#allocation5 + $0xb0] sm:$0xff]
    %v188 = vld [vmem:[#allocation5 + $0xb8] sm:$0xff]
    %v189 = vld [vmem:[#allocation5 + $0xc0] sm:$0xff]
    %v190 = vld [vmem:[#allocation5 + $0xc8] sm:$0xff]
    %v191 = vld [vmem:[#allocation5 + $0xd0] sm:$0xff]
    %v192 = vld [vmem:[#allocation5 + $0xd8] sm:$0xff]
    %v193 = vld [vmem:[#allocation5 + $0xe0] sm:$0xff]
    %v194 = vld [vmem:[#allocation5 + $0xe8] sm:$0xff]
    %v195 = vld [vmem:[#allocation5 + $0xf0] sm:$0xff]
    %v196 = vld [vmem:[#allocation5 + $0xf8] sm:$0xff]
    %v197 = vld [vmem:[#allocation5 + $0x100] sm:$0xff]
    %v198 = vld [vmem:[#allocation5 + $0x108] sm:$0xff]
    %v199 = vld [vmem:[#allocation5 + $0x110] sm:$0xff]
    %v200 = vld [vmem:[#allocation5 + $0x118] sm:$0xff]
    %v201 = vld [vmem:[#allocation5 + $0x120] sm:$0xff]
    %v202 = vld [vmem:[#allocation5 + $0x128] sm:$0xff]
    %v203 = vld [vmem:[#allocation5 + $0x130] sm:$0xff]
    %v204 = vld [vmem:[#allocation5 + $0x138] sm:$0xff]
    %v205 = vld [vmem:[#allocation5 + $0x140] sm:$0xff]
    %v206 = vld [vmem:[#allocation5 + $0x148] sm:$0xff]
    %v207 = vld [vmem:[#allocation5 + $0x150] sm:$0xff]
    %v208 = vld [vmem:[#allocation5 + $0x158] sm:$0xff]
    %v209 = vld [vmem:[#allocation5 + $0x160] sm:$0xff]
    %v210 = vld [vmem:[#allocation5 + $0x168] sm:$0xff]
    %v211 = vld [vmem:[#allocation5 + $0x170] sm:$0xff]
    %v212 = vld [vmem:[#allocation5 + $0x178] sm:$0xff]
    %v213 = vld [vmem:[#allocation5 + $0x180] sm:$0xff]
    %v214 = vld [vmem:[#allocation5 + $0x188] sm:$0xff]
    %v215 = vld [vmem:[#allocation5 + $0x190] sm:$0xff]
    %v216 = vld [vmem:[#allocation5 + $0x198] sm:$0xff]
    %v217 = vld [vmem:[#allocation5 + $0x1a0] sm:$0xff]
    %v218 = vld [vmem:[#allocation5 + $0x1a8] sm:$0xff]
    %v219 = vld [vmem:[#allocation5 + $0x1b0] sm:$0xff]
    %v220 = vld [vmem:[#allocation5 + $0x1b8] sm:$0xff]
    %v221 = vld [vmem:[#allocation5 + $0x1c0] sm:$0xff]
    %v222 = vld [vmem:[#allocation5 + $0x1c8] sm:$0xff]
    %v223 = vld [vmem:[#allocation5 + $0x1d0] sm:$0xff]
    %v224 = vld [vmem:[#allocation5 + $0x1d8] sm:$0xff]
    %v225 = vld [vmem:[#allocation5 + $0x1e0] sm:$0xff]
    %v226 = vld [vmem:[#allocation5 + $0x1e8] sm:$0xff]
    %v227 = vld [vmem:[#allocation5 + $0x1f0] sm:$0xff]
    %v228 = vld [vmem:[#allocation5 + $0x1f8] sm:$0xff]
    %v229 = vld [vmem:[#allocation5 + $0x200] sm:$0xff]
    %v230 = vld [vmem:[#allocation5 + $0x208] sm:$0xff]
    %v231 = vld [vmem:[#allocation5 + $0x210] sm:$0xff]
    %v232 = vld [vmem:[#allocation5 + $0x218] sm:$0xff]
    %v233 = vld [vmem:[#allocation5 + $0x220] sm:$0xff]
    %v234 = vld [vmem:[#allocation5 + $0x228] sm:$0xff]
    %v235 = vld [vmem:[#allocation5 + $0x230] sm:$0xff]
    %v236 = vld [vmem:[#allocation5 + $0x238] sm:$0xff]
    %v237 = vld [vmem:[#allocation5 + $0x240] sm:$0xff]
    %v238 = vld [vmem:[#allocation5 + $0x248] sm:$0xff]
    %v239 = vld [vmem:[#allocation5 + $0x250] sm:$0xff]
    %v240 = vld [vmem:[#allocation5 + $0x258] sm:$0xff]
    %v241 = vld [vmem:[#allocation5 + $0x260] sm:$0xff]
    %v242 = vld [vmem:[#allocation5 + $0x268] sm:$0xff]
    %v243 = vld [vmem:[#allocation5 + $0x270] sm:$0xff]
    %v244 = vld [vmem:[#allocation5 + $0x278] sm:$0xff]
    %v245 = vld [vmem:[#allocation5 + $0x280] sm:$0xff]
    %v246 = vld [vmem:[#allocation5 + $0x288] sm:$0xff]
    %v247 = vld [vmem:[#allocation5 + $0x290] sm:$0xff]
    %v248 = vld [vmem:[#allocation5 + $0x298] sm:$0xff]
    %v249 = vld [vmem:[#allocation5 + $0x2a0] sm:$0xff]
    %v250 = vld [vmem:[#allocation5 + $0x2a8] sm:$0xff]
    %v251 = vld [vmem:[#allocation5 + $0x2b0] sm:$0xff]
    %v252 = vld [vmem:[#allocation5 + $0x2b8] sm:$0xff]
    %v253 = vld [vmem:[#allocation5 + $0x2c0] sm:$0xff]
    %v254 = vld [vmem:[#allocation5 + $0x2c8] sm:$0xff]
    %v255 = vld [vmem:[#allocation5 + $0x2d0] sm:$0xff]
    %v256 = vld [vmem:[#allocation5 + $0x2d8] sm:$0xff]
    %v257 = vld [vmem:[#allocation5 + $0x2e0] sm:$0xff]
    %v258 = vld [vmem:[#allocation5 + $0x2e8] sm:$0xff]
    %v259 = vld [vmem:[#allocation5 + $0x2f0] sm:$0xff]
    %v260 = vld [vmem:[#allocation5 + $0x2f8] sm:$0xff]
    %v261 = vld [vmem:[#allocation5 + $0x300] sm:$0xff]
    %v262 = vld [vmem:[#allocation5 + $0x308] sm:$0xff]
    %v263 = vld [vmem:[#allocation5 + $0x310] sm:$0xff]
    %v264 = vld [vmem:[#allocation5 + $0x318] sm:$0xff]
    %v265 = vld [vmem:[#allocation5 + $0x320] sm:$0xff]
    %v266 = vld [vmem:[#allocation5 + $0x328] sm:$0xff]
    %v267 = vld [vmem:[#allocation5 + $0x330] sm:$0xff]
    %v268 = vld [vmem:[#allocation5 + $0x338] sm:$0xff]
    %v269 = vld [vmem:[#allocation5 + $0x340] sm:$0xff]
    %v270 = vld [vmem:[#allocation5 + $0x348] sm:$0xff]
    %v271 = vld [vmem:[#allocation5 + $0x350] sm:$0xff]
    %v272 = vld [vmem:[#allocation5 + $0x358] sm:$0xff]
    %v273 = vld [vmem:[#allocation5 + $0x360] sm:$0xff]
    %v274 = vld [vmem:[#allocation5 + $0x368] sm:$0xff]
    %v275 = vld [vmem:[#allocation5 + $0x370] sm:$0xff]
    %v276 = vld [vmem:[#allocation5 + $0x378] sm:$0xff]
    %v277 = vld [vmem:[#allocation5 + $0x380] sm:$0xff]
    %v278 = vld [vmem:[#allocation5 + $0x388] sm:$0xff]
    %v279 = vld [vmem:[#allocation5 + $0x390] sm:$0xff]
    %v280 = vld [vmem:[#allocation5 + $0x398] sm:$0xff]
    %v281 = vld [vmem:[#allocation5 + $0x3a0] sm:$0xff]
    %v282 = vld [vmem:[#allocation5 + $0x3a8] sm:$0xff]
    %v283 = vld [vmem:[#allocation5 + $0x3b0] sm:$0xff]
    %v284 = vld [vmem:[#allocation5 + $0x3b8] sm:$0xff]
    %v285 = vld [vmem:[#allocation5 + $0x3c0] sm:$0xff]
    %v286 = vld [vmem:[#allocation5 + $0x3c8] sm:$0xff]
    %v287 = vld [vmem:[#allocation5 + $0x3d0] sm:$0xff]
    %v288 = vld [vmem:[#allocation5 + $0x3d8] sm:$0xff]
    %v289 = vld [vmem:[#allocation5 + $0x3e0] sm:$0xff]
    %v290 = vld [vmem:[#allocation5 + $0x3e8] sm:$0xff]
    %v291 = vld [vmem:[#allocation5 + $0x3f0] sm:$0xff]
    %v292 = vld [vmem:[#allocation5 + $0x3f8] sm:$0xff]
    %v294 = vlaneseq
    %v295 = vshrl.u32 %v294, 7
    %v296 = vsub.s32 0, %v295
    %v297 = vrot.slane %v159, %v296
    %v298 = vlaneseq
    %v299 = vshrl.u32 %v298, 7
    %v300 = vsub.s32 4, %v299
    %v301 = vrot.slane %v159, %v300
    %v304 = vlaneseq
    %v305 = vshrl.u32 %v304, 7
    %v306 = vsub.s32 0, %v305
    %v307 = vrot.slane %v297, %v306
    %v308 = vlaneseq
    %v309 = vshrl.u32 %v308, 7
    %v310 = vsub.s32 0, %v309
    %v311 = vrot.slane %v301, %v310
    %v313 = vcombine.high %v164, %v164
    %v315 = vunpack.c.l.s4 1966171168
    %v316 = vunpack.c.0.s8 %v315
    %v317 = vlaneseq
    %v318 = vshrl.u32 %v317, 7
    %v319 = vsub.s32 %v316, %v318
    %v320 = vrot.slane %v164, %v319
    %v322 = vunpack.c.l.s4 1966171168
    %v323 = vunpack.c.0.s8 %v322
    %v324 = vlaneseq
    %v325 = vshrl.u32 %v324, 7
    %v326 = vsub.s32 %v323, %v325
    %v327 = vrot.slane %v313, %v326
    %v328 = vcombine.high %v320, %v320
    %v329 = vcombine.high %v327, %v327
    %v331 = vunpack.c.l.s4 1966171168
    %v332 = vunpack.c.0.s8 %v331
    %v333 = vlaneseq
    %v334 = vshrl.u32 %v333, 7
    %v335 = vsub.s32 %v332, %v334
    %v336 = vrot.slane %v320, %v335
    %v338 = vunpack.c.l.s4 1966171168
    %v339 = vunpack.c.0.s8 %v338
    %v340 = vlaneseq
    %v341 = vshrl.u32 %v340, 7
    %v342 = vsub.s32 %v339, %v341
    %v343 = vrot.slane %v327, %v342
    %v345 = vunpack.c.l.s4 1966171168
    %v346 = vunpack.c.0.s8 %v345
    %v347 = vlaneseq
    %v348 = vshrl.u32 %v347, 7
    %v349 = vsub.s32 %v346, %v348
    %v350 = vrot.slane %v328, %v349
    %v352 = vunpack.c.l.s4 1966171168
    %v353 = vunpack.c.0.s8 %v352
    %v354 = vlaneseq
    %v355 = vshrl.u32 %v354, 7
    %v356 = vsub.s32 %v353, %v355
    %v357 = vrot.slane %v329, %v356
    %v358 = vcombine.high %v336, %v336
    %v359 = vcombine.high %v343, %v343
    %v360 = vcombine.high %v350, %v350
    %v361 = vcombine.high %v357, %v357
    %v498 = vunpack.c.l.b16 %v165
    %v499 = vunpack.c.h.b16 %v165
    %v500 = vunpack.c.l.b16 %v166
    %v501 = vunpack.c.h.b16 %v166
    %v502 = vunpack.c.l.b16 %v167
    %v503 = vunpack.c.h.b16 %v167
    %v504 = vunpack.c.l.b16 %v168
    %v505 = vunpack.c.h.b16 %v168
    %v506 = vunpack.c.l.b16 %v169
    %v507 = vunpack.c.h.b16 %v169
    %v508 = vunpack.c.l.b16 %v170
    %v509 = vunpack.c.h.b16 %v170
    %v510 = vunpack.c.l.b16 %v171
    %v511 = vunpack.c.h.b16 %v171
    %v512 = vunpack.c.l.b16 %v172
    %v513 = vunpack.c.h.b16 %v172
    %v514 = vunpack.c.l.b16 %v173
    %v515 = vunpack.c.h.b16 %v173
    %v516 = vunpack.c.l.b16 %v174
    %v517 = vunpack.c.h.b16 %v174
    %v518 = vunpack.c.l.b16 %v175
    %v519 = vunpack.c.h.b16 %v175
    %v520 = vunpack.c.l.b16 %v176
    %v521 = vunpack.c.h.b16 %v176
    %v522 = vunpack.c.l.b16 %v177
    %v523 = vunpack.c.h.b16 %v177
    %v524 = vunpack.c.l.b16 %v178
    %v525 = vunpack.c.h.b16 %v178
    %v526 = vunpack.c.l.b16 %v179
    %v527 = vunpack.c.h.b16 %v179
    %v528 = vunpack.c.l.b16 %v180
    %v529 = vunpack.c.h.b16 %v180
    %v530 = vunpack.c.l.b16 %v181
    %v531 = vunpack.c.h.b16 %v181
    %v532 = vunpack.c.l.b16 %v182
    %v533 = vunpack.c.h.b16 %v182
    %v534 = vunpack.c.l.b16 %v183
    %v535 = vunpack.c.h.b16 %v183
    %v536 = vunpack.c.l.b16 %v184
    %v537 = vunpack.c.h.b16 %v184
    %v538 = vunpack.c.l.b16 %v185
    %v539 = vunpack.c.h.b16 %v185
    %v540 = vunpack.c.l.b16 %v186
    %v541 = vunpack.c.h.b16 %v186
    %v542 = vunpack.c.l.b16 %v187
    %v543 = vunpack.c.h.b16 %v187
    %v544 = vunpack.c.l.b16 %v188
    %v545 = vunpack.c.h.b16 %v188
    %v546 = vunpack.c.l.b16 %v189
    %v547 = vunpack.c.h.b16 %v189
    %v548 = vunpack.c.l.b16 %v190
    %v549 = vunpack.c.h.b16 %v190
    %v550 = vunpack.c.l.b16 %v191
    %v551 = vunpack.c.h.b16 %v191
    %v552 = vunpack.c.l.b16 %v192
    %v553 = vunpack.c.h.b16 %v192
    %v554 = vunpack.c.l.b16 %v193
    %v555 = vunpack.c.h.b16 %v193
    %v556 = vunpack.c.l.b16 %v194
    %v557 = vunpack.c.h.b16 %v194
    %v558 = vunpack.c.l.b16 %v195
    %v559 = vunpack.c.h.b16 %v195
    %v560 = vunpack.c.l.b16 %v196
    %v561 = vunpack.c.h.b16 %v196
    %v562 = vunpack.c.l.b16 %v197
    %v563 = vunpack.c.h.b16 %v197
    %v564 = vunpack.c.l.b16 %v198
    %v565 = vunpack.c.h.b16 %v198
    %v566 = vunpack.c.l.b16 %v199
    %v567 = vunpack.c.h.b16 %v199
    %v568 = vunpack.c.l.b16 %v200
    %v569 = vunpack.c.h.b16 %v200
    %v570 = vunpack.c.l.b16 %v201
    %v571 = vunpack.c.h.b16 %v201
    %v572 = vunpack.c.l.b16 %v202
    %v573 = vunpack.c.h.b16 %v202
    %v574 = vunpack.c.l.b16 %v203
    %v575 = vunpack.c.h.b16 %v203
    %v576 = vunpack.c.l.b16 %v204
    %v577 = vunpack.c.h.b16 %v204
    %v578 = vunpack.c.l.b16 %v205
    %v579 = vunpack.c.h.b16 %v205
    %v580 = vunpack.c.l.b16 %v206
    %v581 = vunpack.c.h.b16 %v206
    %v582 = vunpack.c.l.b16 %v207
    %v583 = vunpack.c.h.b16 %v207
    %v584 = vunpack.c.l.b16 %v208
    %v585 = vunpack.c.h.b16 %v208
    %v586 = vunpack.c.l.b16 %v209
    %v587 = vunpack.c.h.b16 %v209
    %v588 = vunpack.c.l.b16 %v210
    %v589 = vunpack.c.h.b16 %v210
    %v590 = vunpack.c.l.b16 %v211
    %v591 = vunpack.c.h.b16 %v211
    %v592 = vunpack.c.l.b16 %v212
    %v593 = vunpack.c.h.b16 %v212
    %v594 = vunpack.c.l.b16 %v213
    %v595 = vunpack.c.h.b16 %v213
    %v596 = vunpack.c.l.b16 %v214
    %v597 = vunpack.c.h.b16 %v214
    %v598 = vunpack.c.l.b16 %v215
    %v599 = vunpack.c.h.b16 %v215
    %v600 = vunpack.c.l.b16 %v216
    %v601 = vunpack.c.h.b16 %v216
    %v602 = vunpack.c.l.b16 %v217
    %v603 = vunpack.c.h.b16 %v217
    %v604 = vunpack.c.l.b16 %v218
    %v605 = vunpack.c.h.b16 %v218
    %v606 = vunpack.c.l.b16 %v219
    %v607 = vunpack.c.h.b16 %v219
    %v608 = vunpack.c.l.b16 %v220
    %v609 = vunpack.c.h.b16 %v220
    %v610 = vunpack.c.l.b16 %v221
    %v611 = vunpack.c.h.b16 %v221
    %v612 = vunpack.c.l.b16 %v222
    %v613 = vunpack.c.h.b16 %v222
    %v614 = vunpack.c.l.b16 %v223
    %v615 = vunpack.c.h.b16 %v223
    %v616 = vunpack.c.l.b16 %v224
    %v617 = vunpack.c.h.b16 %v224
    %v618 = vunpack.c.l.b16 %v225
    %v619 = vunpack.c.h.b16 %v225
    %v620 = vunpack.c.l.b16 %v226
    %v621 = vunpack.c.h.b16 %v226
    %v622 = vunpack.c.l.b16 %v227
    %v623 = vunpack.c.h.b16 %v227
    %v624 = vunpack.c.l.b16 %v228
    %v625 = vunpack.c.h.b16 %v228
    %v626 = vunpack.c.l.b16 %v229
    %v627 = vunpack.c.h.b16 %v229
    %v628 = vunpack.c.l.b16 %v230
    %v629 = vunpack.c.h.b16 %v230
    %v630 = vunpack.c.l.b16 %v231
    %v631 = vunpack.c.h.b16 %v231
    %v632 = vunpack.c.l.b16 %v232
    %v633 = vunpack.c.h.b16 %v232
    %v634 = vunpack.c.l.b16 %v233
    %v635 = vunpack.c.h.b16 %v233
    %v636 = vunpack.c.l.b16 %v234
    %v637 = vunpack.c.h.b16 %v234
    %v638 = vunpack.c.l.b16 %v235
    %v639 = vunpack.c.h.b16 %v235
    %v640 = vunpack.c.l.b16 %v236
    %v641 = vunpack.c.h.b16 %v236
    %v642 = vunpack.c.l.b16 %v237
    %v643 = vunpack.c.h.b16 %v237
    %v644 = vunpack.c.l.b16 %v238
    %v645 = vunpack.c.h.b16 %v238
    %v646 = vunpack.c.l.b16 %v239
    %v647 = vunpack.c.h.b16 %v239
    %v648 = vunpack.c.l.b16 %v240
    %v649 = vunpack.c.h.b16 %v240
    %v650 = vunpack.c.l.b16 %v241
    %v651 = vunpack.c.h.b16 %v241
    %v652 = vunpack.c.l.b16 %v242
    %v653 = vunpack.c.h.b16 %v242
    %v654 = vunpack.c.l.b16 %v243
    %v655 = vunpack.c.h.b16 %v243
    %v656 = vunpack.c.l.b16 %v244
    %v657 = vunpack.c.h.b16 %v244
    %v658 = vunpack.c.l.b16 %v245
    %v659 = vunpack.c.h.b16 %v245
    %v660 = vunpack.c.l.b16 %v246
    %v661 = vunpack.c.h.b16 %v246
    %v662 = vunpack.c.l.b16 %v247
    %v663 = vunpack.c.h.b16 %v247
    %v664 = vunpack.c.l.b16 %v248
    %v665 = vunpack.c.h.b16 %v248
    %v666 = vunpack.c.l.b16 %v249
    %v667 = vunpack.c.h.b16 %v249
    %v668 = vunpack.c.l.b16 %v250
    %v669 = vunpack.c.h.b16 %v250
    %v670 = vunpack.c.l.b16 %v251
    %v671 = vunpack.c.h.b16 %v251
    %v672 = vunpack.c.l.b16 %v252
    %v673 = vunpack.c.h.b16 %v252
    %v674 = vunpack.c.l.b16 %v253
    %v675 = vunpack.c.h.b16 %v253
    %v676 = vunpack.c.l.b16 %v254
    %v677 = vunpack.c.h.b16 %v254
    %v678 = vunpack.c.l.b16 %v255
    %v679 = vunpack.c.h.b16 %v255
    %v680 = vunpack.c.l.b16 %v256
    %v681 = vunpack.c.h.b16 %v256
    %v682 = vunpack.c.l.b16 %v257
    %v683 = vunpack.c.h.b16 %v257
    %v684 = vunpack.c.l.b16 %v258
    %v685 = vunpack.c.h.b16 %v258
    %v686 = vunpack.c.l.b16 %v259
    %v687 = vunpack.c.h.b16 %v259
    %v688 = vunpack.c.l.b16 %v260
    %v689 = vunpack.c.h.b16 %v260
    %v690 = vunpack.c.l.b16 %v261
    %v691 = vunpack.c.h.b16 %v261
    %v692 = vunpack.c.l.b16 %v262
    %v693 = vunpack.c.h.b16 %v262
    %v694 = vunpack.c.l.b16 %v263
    %v695 = vunpack.c.h.b16 %v263
    %v696 = vunpack.c.l.b16 %v264
    %v697 = vunpack.c.h.b16 %v264
    %v698 = vunpack.c.l.b16 %v265
    %v699 = vunpack.c.h.b16 %v265
    %v700 = vunpack.c.l.b16 %v266
    %v701 = vunpack.c.h.b16 %v266
    %v702 = vunpack.c.l.b16 %v267
    %v703 = vunpack.c.h.b16 %v267
    %v704 = vunpack.c.l.b16 %v268
    %v705 = vunpack.c.h.b16 %v268
    %v706 = vunpack.c.l.b16 %v269
    %v707 = vunpack.c.h.b16 %v269
    %v708 = vunpack.c.l.b16 %v270
    %v709 = vunpack.c.h.b16 %v270
    %v710 = vunpack.c.l.b16 %v271
    %v711 = vunpack.c.h.b16 %v271
    %v712 = vunpack.c.l.b16 %v272
    %v713 = vunpack.c.h.b16 %v272
    %v714 = vunpack.c.l.b16 %v273
    %v715 = vunpack.c.h.b16 %v273
    %v716 = vunpack.c.l.b16 %v274
    %v717 = vunpack.c.h.b16 %v274
    %v718 = vunpack.c.l.b16 %v275
    %v719 = vunpack.c.h.b16 %v275
    %v720 = vunpack.c.l.b16 %v276
    %v721 = vunpack.c.h.b16 %v276
    %v722 = vunpack.c.l.b16 %v277
    %v723 = vunpack.c.h.b16 %v277
    %v724 = vunpack.c.l.b16 %v278
    %v725 = vunpack.c.h.b16 %v278
    %v726 = vunpack.c.l.b16 %v279
    %v727 = vunpack.c.h.b16 %v279
    %v728 = vunpack.c.l.b16 %v280
    %v729 = vunpack.c.h.b16 %v280
    %v730 = vunpack.c.l.b16 %v281
    %v731 = vunpack.c.h.b16 %v281
    %v732 = vunpack.c.l.b16 %v282
    %v733 = vunpack.c.h.b16 %v282
    %v734 = vunpack.c.l.b16 %v283
    %v735 = vunpack.c.h.b16 %v283
    %v736 = vunpack.c.l.b16 %v284
    %v737 = vunpack.c.h.b16 %v284
    %v738 = vunpack.c.l.b16 %v285
    %v739 = vunpack.c.h.b16 %v285
    %v740 = vunpack.c.l.b16 %v286
    %v741 = vunpack.c.h.b16 %v286
    %v742 = vunpack.c.l.b16 %v287
    %v743 = vunpack.c.h.b16 %v287
    %v744 = vunpack.c.l.b16 %v288
    %v745 = vunpack.c.h.b16 %v288
    %v746 = vunpack.c.l.b16 %v289
    %v747 = vunpack.c.h.b16 %v289
    %v748 = vunpack.c.l.b16 %v290
    %v749 = vunpack.c.h.b16 %v290
    %v750 = vunpack.c.l.b16 %v291
    %v751 = vunpack.c.h.b16 %v291
    %v752 = vunpack.c.l.b16 %v292
    %v753 = vunpack.c.h.b16 %v292
    %v754 = vpack.c.b16 %v500, %v498
    %v755 = vpack.c.b16 %v501, %v499
    %v756 = vpack.c.b16 %v504, %v502
    %v757 = vpack.c.b16 %v505, %v503
    %v758 = vpack.c.b16 %v508, %v506
    %v759 = vpack.c.b16 %v509, %v507
    %v760 = vpack.c.b16 %v512, %v510
    %v761 = vpack.c.b16 %v513, %v511
    %v762 = vpack.c.b16 %v516, %v514
    %v763 = vpack.c.b16 %v517, %v515
    %v764 = vpack.c.b16 %v520, %v518
    %v765 = vpack.c.b16 %v521, %v519
    %v766 = vpack.c.b16 %v524, %v522
    %v767 = vpack.c.b16 %v525, %v523
    %v768 = vpack.c.b16 %v528, %v526
    %v769 = vpack.c.b16 %v529, %v527
    %v770 = vpack.c.b16 %v532, %v530
    %v771 = vpack.c.b16 %v533, %v531
    %v772 = vpack.c.b16 %v536, %v534
    %v773 = vpack.c.b16 %v537, %v535
    %v774 = vpack.c.b16 %v540, %v538
    %v775 = vpack.c.b16 %v541, %v539
    %v776 = vpack.c.b16 %v544, %v542
    %v777 = vpack.c.b16 %v545, %v543
    %v778 = vpack.c.b16 %v548, %v546
    %v779 = vpack.c.b16 %v549, %v547
    %v780 = vpack.c.b16 %v552, %v550
    %v781 = vpack.c.b16 %v553, %v551
    %v782 = vpack.c.b16 %v556, %v554
    %v783 = vpack.c.b16 %v557, %v555
    %v784 = vpack.c.b16 %v560, %v558
    %v785 = vpack.c.b16 %v561, %v559
    %v786 = vpack.c.b16 %v564, %v562
    %v787 = vpack.c.b16 %v565, %v563
    %v788 = vpack.c.b16 %v568, %v566
    %v789 = vpack.c.b16 %v569, %v567
    %v790 = vpack.c.b16 %v572, %v570
    %v791 = vpack.c.b16 %v573, %v571
    %v792 = vpack.c.b16 %v576, %v574
    %v793 = vpack.c.b16 %v577, %v575
    %v794 = vpack.c.b16 %v580, %v578
    %v795 = vpack.c.b16 %v581, %v579
    %v796 = vpack.c.b16 %v584, %v582
    %v797 = vpack.c.b16 %v585, %v583
    %v798 = vpack.c.b16 %v588, %v586
    %v799 = vpack.c.b16 %v589, %v587
    %v800 = vpack.c.b16 %v592, %v590
    %v801 = vpack.c.b16 %v593, %v591
    %v802 = vpack.c.b16 %v596, %v594
    %v803 = vpack.c.b16 %v597, %v595
    %v804 = vpack.c.b16 %v600, %v598
    %v805 = vpack.c.b16 %v601, %v599
    %v806 = vpack.c.b16 %v604, %v602
    %v807 = vpack.c.b16 %v605, %v603
    %v808 = vpack.c.b16 %v608, %v606
    %v809 = vpack.c.b16 %v609, %v607
    %v810 = vpack.c.b16 %v612, %v610
    %v811 = vpack.c.b16 %v613, %v611
    %v812 = vpack.c.b16 %v616, %v614
    %v813 = vpack.c.b16 %v617, %v615
    %v814 = vpack.c.b16 %v620, %v618
    %v815 = vpack.c.b16 %v621, %v619
    %v816 = vpack.c.b16 %v624, %v622
    %v817 = vpack.c.b16 %v625, %v623
    %v818 = vpack.c.b16 %v628, %v626
    %v819 = vpack.c.b16 %v629, %v627
    %v820 = vpack.c.b16 %v632, %v630
    %v821 = vpack.c.b16 %v633, %v631
    %v822 = vpack.c.b16 %v636, %v634
    %v823 = vpack.c.b16 %v637, %v635
    %v824 = vpack.c.b16 %v640, %v638
    %v825 = vpack.c.b16 %v641, %v639
    %v826 = vpack.c.b16 %v644, %v642
    %v827 = vpack.c.b16 %v645, %v643
    %v828 = vpack.c.b16 %v648, %v646
    %v829 = vpack.c.b16 %v649, %v647
    %v830 = vpack.c.b16 %v652, %v650
    %v831 = vpack.c.b16 %v653, %v651
    %v832 = vpack.c.b16 %v656, %v654
    %v833 = vpack.c.b16 %v657, %v655
    %v834 = vpack.c.b16 %v660, %v658
    %v835 = vpack.c.b16 %v661, %v659
    %v836 = vpack.c.b16 %v664, %v662
    %v837 = vpack.c.b16 %v665, %v663
    %v838 = vpack.c.b16 %v668, %v666
    %v839 = vpack.c.b16 %v669, %v667
    %v840 = vpack.c.b16 %v672, %v670
    %v841 = vpack.c.b16 %v673, %v671
    %v842 = vpack.c.b16 %v676, %v674
    %v843 = vpack.c.b16 %v677, %v675
    %v844 = vpack.c.b16 %v680, %v678
    %v845 = vpack.c.b16 %v681, %v679
    %v846 = vpack.c.b16 %v684, %v682
    %v847 = vpack.c.b16 %v685, %v683
    %v848 = vpack.c.b16 %v688, %v686
    %v849 = vpack.c.b16 %v689, %v687
    %v850 = vpack.c.b16 %v692, %v690
    %v851 = vpack.c.b16 %v693, %v691
    %v852 = vpack.c.b16 %v696, %v694
    %v853 = vpack.c.b16 %v697, %v695
    %v854 = vpack.c.b16 %v700, %v698
    %v855 = vpack.c.b16 %v701, %v699
    %v856 = vpack.c.b16 %v704, %v702
    %v857 = vpack.c.b16 %v705, %v703
    %v858 = vpack.c.b16 %v708, %v706
    %v859 = vpack.c.b16 %v709, %v707
    %v860 = vpack.c.b16 %v712, %v710
    %v861 = vpack.c.b16 %v713, %v711
    %v862 = vpack.c.b16 %v716, %v714
    %v863 = vpack.c.b16 %v717, %v715
    %v864 = vpack.c.b16 %v720, %v718
    %v865 = vpack.c.b16 %v721, %v719
    %v866 = vpack.c.b16 %v724, %v722
    %v867 = vpack.c.b16 %v725, %v723
    %v868 = vpack.c.b16 %v728, %v726
    %v869 = vpack.c.b16 %v729, %v727
    %v870 = vpack.c.b16 %v732, %v730
    %v871 = vpack.c.b16 %v733, %v731
    %v872 = vpack.c.b16 %v736, %v734
    %v873 = vpack.c.b16 %v737, %v735
    %v874 = vpack.c.b16 %v740, %v738
    %v875 = vpack.c.b16 %v741, %v739
    %v876 = vpack.c.b16 %v744, %v742
    %v877 = vpack.c.b16 %v745, %v743
    %v878 = vpack.c.b16 %v748, %v746
    %v879 = vpack.c.b16 %v749, %v747
    %v880 = vpack.c.b16 %v752, %v750
    %v881 = vpack.c.b16 %v753, %v751
    %1010 = vmatprep.subr.bf16.mxu0 %v755
    %1011 = vmatpush1.bf16.msra.mxu0 %v754
    %1012 = vmatprep.subr.bf16.mxu0 %v757
    %1013 = vmatpush1.bf16.msra.mxu0 %v756
    %1014 = vmatprep.subr.bf16.mxu0 %v759
    %1015 = vmatpush1.bf16.msra.mxu0 %v758
    %1016 = vmatprep.subr.bf16.mxu0 %v761
    %1017 = vmatpush1.bf16.msra.mxu0 %v760
    %1018 = vmatprep.subr.bf16.mxu0 %v763
    %1019 = vmatpush1.bf16.msra.mxu0 %v762
    %1020 = vmatprep.subr.bf16.mxu0 %v765
    %1021 = vmatpush1.bf16.msra.mxu0 %v764
    %1022 = vmatprep.subr.bf16.mxu0 %v767
    %1023 = vmatpush1.bf16.msra.mxu0 %v766
    %1024 = vmatprep.subr.bf16.mxu0 %v769
    %1025 = vmatpush1.bf16.msra.mxu0 %v768
    %1026 = vmatprep.subr.bf16.mxu0 %v771
    %1027 = vmatpush1.bf16.msra.mxu0 %v770
    %1028 = vmatprep.subr.bf16.mxu0 %v773
    %1029 = vmatpush1.bf16.msra.mxu0 %v772
    %1030 = vmatprep.subr.bf16.mxu0 %v775
    %1031 = vmatpush1.bf16.msra.mxu0 %v774
    %1032 = vmatprep.subr.bf16.mxu0 %v777
    %1033 = vmatpush1.bf16.msra.mxu0 %v776
    %1034 = vmatprep.subr.bf16.mxu0 %v779
    %1035 = vmatpush1.bf16.msra.mxu0 %v778
    %1036 = vmatprep.subr.bf16.mxu0 %v781
    %1037 = vmatpush1.bf16.msra.mxu0 %v780
    %1038 = vmatprep.subr.bf16.mxu0 %v783
    %1039 = vmatpush1.bf16.msra.mxu0 %v782
    %1040 = vmatprep.subr.bf16.mxu0 %v785
    %1041 = vmatpush1.bf16.msra.mxu0 %v784
    %1042 = vmatprep.mubr.bf16.mxu0 %v350
    %1043 = vmatmul.mubr.bf16.gmra.mrb[0].mxu0 %v336
    %v1044 = vpop.f32.mrb[0].mxu0
    %v1045 = vadd.f32 %v307, %v1044
    %v1046 = vpop.f32.mrb[0].mxu0
    %v1047 = vadd.f32 %v311, %v1046
    %v1048 = vpop.f32.mrb[0].mxu0
    %v1049 = vpop.f32.mrb[0].mxu0
    %1050 = vdwg.mxu0
    %1051 = vmatprep.subr.bf16.mxu0 %v787
    %1052 = vmatpush1.bf16.msra.mxu0 %v786
    %1053 = vmatprep.subr.bf16.mxu0 %v789
    %1054 = vmatpush1.bf16.msra.mxu0 %v788
    %1055 = vmatprep.subr.bf16.mxu0 %v791
    %1056 = vmatpush1.bf16.msra.mxu0 %v790
    %1057 = vmatprep.subr.bf16.mxu0 %v793
    %1058 = vmatpush1.bf16.msra.mxu0 %v792
    %1059 = vmatprep.subr.bf16.mxu0 %v795
    %1060 = vmatpush1.bf16.msra.mxu0 %v794
    %1061 = vmatprep.subr.bf16.mxu0 %v797
    %1062 = vmatpush1.bf16.msra.mxu0 %v796
    %1063 = vmatprep.subr.bf16.mxu0 %v799
    %1064 = vmatpush1.bf16.msra.mxu0 %v798
    %1065 = vmatprep.subr.bf16.mxu0 %v801
    %1066 = vmatpush1.bf16.msra.mxu0 %v800
    %1067 = vmatprep.subr.bf16.mxu0 %v803
    %1068 = vmatpush1.bf16.msra.mxu0 %v802
    %1069 = vmatprep.subr.bf16.mxu0 %v805
    %1070 = vmatpush1.bf16.msra.mxu0 %v804
    %1071 = vmatprep.subr.bf16.mxu0 %v807
    %1072 = vmatpush1.bf16.msra.mxu0 %v806
    %1073 = vmatprep.subr.bf16.mxu0 %v809
    %1074 = vmatpush1.bf16.msra.mxu0 %v808
    %1075 = vmatprep.subr.bf16.mxu0 %v811
    %1076 = vmatpush1.bf16.msra.mxu0 %v810
    %1077 = vmatprep.subr.bf16.mxu0 %v813
    %1078 = vmatpush1.bf16.msra.mxu0 %v812
    %1079 = vmatprep.subr.bf16.mxu0 %v815
    %1080 = vmatpush1.bf16.msra.mxu0 %v814
    %1081 = vmatprep.subr.bf16.mxu0 %v817
    %1082 = vmatpush1.bf16.msra.mxu0 %v816
    %1083 = vmatprep.mubr.bf16.mxu0 %v360
    %1084 = vmatmul.mubr.bf16.gmra.mrb[0].mxu0 %v358
    %v1085 = vpop.f32.mrb[0].mxu0
    %v1086 = vadd.f32 %v1045, %v1085
    %v1087 = vpop.f32.mrb[0].mxu0
    %v1088 = vadd.f32 %v1047, %v1087
    %v1089 = vpop.f32.mrb[0].mxu0
    %v1090 = vpop.f32.mrb[0].mxu0
    %1091 = vdwg.mxu0
    %1092 = vmatprep.subr.bf16.mxu0 %v819
    %1093 = vmatpush1.bf16.msra.mxu0 %v818
    %1094 = vmatprep.subr.bf16.mxu0 %v821
    %1095 = vmatpush1.bf16.msra.mxu0 %v820
    %1096 = vmatprep.subr.bf16.mxu0 %v823
    %1097 = vmatpush1.bf16.msra.mxu0 %v822
    %1098 = vmatprep.subr.bf16.mxu0 %v825
    %1099 = vmatpush1.bf16.msra.mxu0 %v824
    %1100 = vmatprep.subr.bf16.mxu0 %v827
    %1101 = vmatpush1.bf16.msra.mxu0 %v826
    %1102 = vmatprep.subr.bf16.mxu0 %v829
    %1103 = vmatpush1.bf16.msra.mxu0 %v828
    %1104 = vmatprep.subr.bf16.mxu0 %v831
    %1105 = vmatpush1.bf16.msra.mxu0 %v830
    %1106 = vmatprep.subr.bf16.mxu0 %v833
    %1107 = vmatpush1.bf16.msra.mxu0 %v832
    %1108 = vmatprep.subr.bf16.mxu0 %v835
    %1109 = vmatpush1.bf16.msra.mxu0 %v834
    %1110 = vmatprep.subr.bf16.mxu0 %v837
    %1111 = vmatpush1.bf16.msra.mxu0 %v836
    %1112 = vmatprep.subr.bf16.mxu0 %v839
    %1113 = vmatpush1.bf16.msra.mxu0 %v838
    %1114 = vmatprep.subr.bf16.mxu0 %v841
    %1115 = vmatpush1.bf16.msra.mxu0 %v840
    %1116 = vmatprep.subr.bf16.mxu0 %v843
    %1117 = vmatpush1.bf16.msra.mxu0 %v842
    %1118 = vmatprep.subr.bf16.mxu0 %v845
    %1119 = vmatpush1.bf16.msra.mxu0 %v844
    %1120 = vmatprep.subr.bf16.mxu0 %v847
    %1121 = vmatpush1.bf16.msra.mxu0 %v846
    %1122 = vmatprep.subr.bf16.mxu0 %v849
    %1123 = vmatpush1.bf16.msra.mxu0 %v848
    %1124 = vmatprep.mubr.bf16.mxu0 %v357
    %1125 = vmatmul.mubr.bf16.gmra.mrb[0].mxu0 %v343
    %v1126 = vpop.f32.mrb[0].mxu0
    %v1127 = vadd.f32 %v1086, %v1126
    %v1128 = vpop.f32.mrb[0].mxu0
    %v1129 = vadd.f32 %v1088, %v1128
    %v1130 = vpop.f32.mrb[0].mxu0
    %v1131 = vpop.f32.mrb[0].mxu0
    %1132 = vdwg.mxu0
    %1133 = vmatprep.subr.bf16.mxu0 %v851
    %1134 = vmatpush1.bf16.msra.mxu0 %v850
    %1135 = vmatprep.subr.bf16.mxu0 %v853
    %1136 = vmatpush1.bf16.msra.mxu0 %v852
    %1137 = vmatprep.subr.bf16.mxu0 %v855
    %1138 = vmatpush1.bf16.msra.mxu0 %v854
    %1139 = vmatprep.subr.bf16.mxu0 %v857
    %1140 = vmatpush1.bf16.msra.mxu0 %v856
    %1141 = vmatprep.subr.bf16.mxu0 %v859
    %1142 = vmatpush1.bf16.msra.mxu0 %v858
    %1143 = vmatprep.subr.bf16.mxu0 %v861
    %1144 = vmatpush1.bf16.msra.mxu0 %v860
    %1145 = vmatprep.subr.bf16.mxu0 %v863
    %1146 = vmatpush1.bf16.msra.mxu0 %v862
    %1147 = vmatprep.subr.bf16.mxu0 %v865
    %1148 = vmatpush1.bf16.msra.mxu0 %v864
    %1149 = vmatprep.subr.bf16.mxu0 %v867
    %1150 = vmatpush1.bf16.msra.mxu0 %v866
    %1151 = vmatprep.subr.bf16.mxu0 %v869
    %1152 = vmatpush1.bf16.msra.mxu0 %v868
    %1153 = vmatprep.subr.bf16.mxu0 %v871
    %1154 = vmatpush1.bf16.msra.mxu0 %v870
    %1155 = vmatprep.subr.bf16.mxu0 %v873
    %1156 = vmatpush1.bf16.msra.mxu0 %v872
    %1157 = vmatprep.subr.bf16.mxu0 %v875
    %1158 = vmatpush1.bf16.msra.mxu0 %v874
    %1159 = vmatprep.subr.bf16.mxu0 %v877
    %1160 = vmatpush1.bf16.msra.mxu0 %v876
    %1161 = vmatprep.subr.bf16.mxu0 %v879
    %1162 = vmatpush1.bf16.msra.mxu0 %v878
    %1163 = vmatprep.subr.bf16.mxu0 %v881
    %1164 = vmatpush1.bf16.msra.mxu0 %v880
    %1165 = vmatprep.mubr.bf16.mxu0 %v361
    %1166 = vmatmul.mubr.bf16.gmra.mrb[0].mxu0 %v359
    %v1167 = vpop.f32.mrb[0].mxu0
    %v1168 = vadd.f32 %v1127, %v1167
    %v1169 = vpop.f32.mrb[0].mxu0
    %v1170 = vadd.f32 %v1129, %v1169
    %v1171 = vpop.f32.mrb[0].mxu0
    %v1172 = vpop.f32.mrb[0].mxu0
    %1173 = vdwg.mxu0
    %v1174 = vpack.c.bf16 %v1168, %v1168
    %v1175 = vpack.c.bf16 %v1170, %v1170
    %v1176 = vld [vmem:[#allocation8] sm:$0xf]
    %v1177 = vld [vmem:[#allocation8 + $0x4] sm:$0xf]
    %v1178 = vld [vmem:[#allocation8 + $0x8] sm:$0xf]
    %v1179 = vld [vmem:[#allocation8 + $0xc] sm:$0xf]
    %v1180 = vld [vmem:[#allocation8 + $0x10] sm:$0xf]
    %v1181 = vld [vmem:[#allocation8 + $0x14] sm:$0xf]
    %v1182 = vld [vmem:[#allocation8 + $0x18] sm:$0xf]
    %v1183 = vld [vmem:[#allocation8 + $0x1c] sm:$0xf]
    %v1184 = vld [vmem:[#allocation8 + $0x20] sm:$0xf]
    %v1185 = vld [vmem:[#allocation8 + $0x24] sm:$0xf]
    %v1186 = vld [vmem:[#allocation8 + $0x28] sm:$0xf]
    %v1187 = vld [vmem:[#allocation8 + $0x2c] sm:$0xf]
    %v1188 = vld [vmem:[#allocation8 + $0x30] sm:$0xf]
    %v1189 = vld [vmem:[#allocation8 + $0x34] sm:$0xf]
    %v1190 = vld [vmem:[#allocation8 + $0x38] sm:$0xf]
    %v1191 = vld [vmem:[#allocation8 + $0x3c] sm:$0xf]
    %v1192 = vld [vmem:[#allocation8 + $0x40] sm:$0xf]
    %v1193 = vld [vmem:[#allocation8 + $0x44] sm:$0xf]
    %v1194 = vld [vmem:[#allocation8 + $0x48] sm:$0xf]
    %v1195 = vld [vmem:[#allocation8 + $0x4c] sm:$0xf]
    %v1196 = vld [vmem:[#allocation8 + $0x50] sm:$0xf]
    %v1197 = vld [vmem:[#allocation8 + $0x54] sm:$0xf]
    %v1198 = vld [vmem:[#allocation8 + $0x58] sm:$0xf]
    %v1199 = vld [vmem:[#allocation8 + $0x5c] sm:$0xf]
    %v1200 = vld [vmem:[#allocation8 + $0x60] sm:$0xf]
    %v1201 = vld [vmem:[#allocation8 + $0x64] sm:$0xf]
    %v1202 = vld [vmem:[#allocation8 + $0x68] sm:$0xf]
    %v1203 = vld [vmem:[#allocation8 + $0x6c] sm:$0xf]
    %v1204 = vld [vmem:[#allocation8 + $0x70] sm:$0xf]
    %v1205 = vld [vmem:[#allocation8 + $0x74] sm:$0xf]
    %v1206 = vld [vmem:[#allocation8 + $0x78] sm:$0xf]
    %v1207 = vld [vmem:[#allocation8 + $0x7c] sm:$0xf]
    %v1208 = vlaneseq
    %v1209 = vshrl.u32 %v1208, 7
    %v1210 = vsub.s32 0, %v1209
    %v1211 = vrot.slane %v160, %v1210
    %v1244 = vunpack.c.l.b16 %v1176
    %v1245 = vunpack.c.l.b16 %v1177
    %v1246 = vunpack.c.l.b16 %v1178
    %v1247 = vunpack.c.l.b16 %v1179
    %v1248 = vunpack.c.l.b16 %v1180
    %v1249 = vunpack.c.l.b16 %v1181
    %v1250 = vunpack.c.l.b16 %v1182
    %v1251 = vunpack.c.l.b16 %v1183
    %v1252 = vunpack.c.l.b16 %v1184
    %v1253 = vunpack.c.l.b16 %v1185
    %v1254 = vunpack.c.l.b16 %v1186
    %v1255 = vunpack.c.l.b16 %v1187
    %v1256 = vunpack.c.l.b16 %v1188
    %v1257 = vunpack.c.l.b16 %v1189
    %v1258 = vunpack.c.l.b16 %v1190
    %v1259 = vunpack.c.l.b16 %v1191
    %v1260 = vunpack.c.l.b16 %v1192
    %v1261 = vunpack.c.l.b16 %v1193
    %v1262 = vunpack.c.l.b16 %v1194
    %v1263 = vunpack.c.l.b16 %v1195
    %v1264 = vunpack.c.l.b16 %v1196
    %v1265 = vunpack.c.l.b16 %v1197
    %v1266 = vunpack.c.l.b16 %v1198
    %v1267 = vunpack.c.l.b16 %v1199
    %v1268 = vunpack.c.l.b16 %v1200
    %v1269 = vunpack.c.l.b16 %v1201
    %v1270 = vunpack.c.l.b16 %v1202
    %v1271 = vunpack.c.l.b16 %v1203
    %v1272 = vunpack.c.l.b16 %v1204
    %v1273 = vunpack.c.l.b16 %v1205
    %v1274 = vunpack.c.l.b16 %v1206
    %v1275 = vunpack.c.l.b16 %v1207
    %v1276 = vpack.c.b16 %v1245, %v1244
    %v1277 = vpack.c.b16 %v1247, %v1246
    %v1278 = vpack.c.b16 %v1249, %v1248
    %v1279 = vpack.c.b16 %v1251, %v1250
    %v1280 = vpack.c.b16 %v1253, %v1252
    %v1281 = vpack.c.b16 %v1255, %v1254
    %v1282 = vpack.c.b16 %v1257, %v1256
    %v1283 = vpack.c.b16 %v1259, %v1258
    %v1284 = vpack.c.b16 %v1261, %v1260
    %v1285 = vpack.c.b16 %v1263, %v1262
    %v1286 = vpack.c.b16 %v1265, %v1264
    %v1287 = vpack.c.b16 %v1267, %v1266
    %v1288 = vpack.c.b16 %v1269, %v1268
    %v1289 = vpack.c.b16 %v1271, %v1270
    %v1290 = vpack.c.b16 %v1273, %v1272
    %v1291 = vpack.c.b16 %v1275, %v1274
    %1308 = vmatprep.subr.bf16.mxu0 0
    %1309 = vmatpush1.bf16.msra.mxu0 %v1276
    %1310 = vmatprep.subr.bf16.mxu0 0
    %1311 = vmatpush1.bf16.msra.mxu0 %v1277
    %1312 = vmatprep.subr.bf16.mxu0 0
    %1313 = vmatpush1.bf16.msra.mxu0 %v1278
    %1314 = vmatprep.subr.bf16.mxu0 0
    %1315 = vmatpush1.bf16.msra.mxu0 %v1279
    %1316 = vmatprep.subr.bf16.mxu0 0
    %1317 = vmatpush1.bf16.msra.mxu0 %v1280
    %1318 = vmatprep.subr.bf16.mxu0 0
    %1319 = vmatpush1.bf16.msra.mxu0 %v1281
    %1320 = vmatprep.subr.bf16.mxu0 0
    %1321 = vmatpush1.bf16.msra.mxu0 %v1282
    %1322 = vmatprep.subr.bf16.mxu0 0
    %1323 = vmatpush1.bf16.msra.mxu0 %v1283
    %1324 = vmatprep.subr.bf16.mxu0 0
    %1325 = vmatpush1.bf16.msra.mxu0 %v1284
    %1326 = vmatprep.subr.bf16.mxu0 0
    %1327 = vmatpush1.bf16.msra.mxu0 %v1285
    %1328 = vmatprep.subr.bf16.mxu0 0
    %1329 = vmatpush1.bf16.msra.mxu0 %v1286
    %1330 = vmatprep.subr.bf16.mxu0 0
    %1331 = vmatpush1.bf16.msra.mxu0 %v1287
    %1332 = vmatprep.subr.bf16.mxu0 0
    %1333 = vmatpush1.bf16.msra.mxu0 %v1288
    %1334 = vmatprep.subr.bf16.mxu0 0
    %1335 = vmatpush1.bf16.msra.mxu0 %v1289
    %1336 = vmatprep.subr.bf16.mxu0 0
    %1337 = vmatpush1.bf16.msra.mxu0 %v1290
    %1338 = vmatprep.subr.bf16.mxu0 0
    %1339 = vmatpush1.bf16.msra.mxu0 %v1291
    %1340 = vmatprep.mubr.bf16.mxu0 %v1175
    %1341 = vmatmul.mubr.bf16.gmra.mrb[0].mxu0 %v1174
    %v1342 = vpop.f32.mrb[0].mxu0
    %v1343 = vadd.f32 %v1211, %v1342
    %v1344 = vpop.f32.mrb[0].mxu0
    %v1345 = vpop.f32.mrb[0].mxu0
    %v1346 = vpop.f32.mrb[0].mxu0
    %1347 = vdwg.mxu0
    %v1348 = vmax.f32 %v1343, 0.0
    %vm1349 = vcmask 1041408
    %v1350 = vsel %vm1349, %v1348, 0.0
    %1351 = vadd.xlane.f32.xlu0 %v1350
    %v1352 = vpop.xlane.xlu0 %1351
    %v1353 = vmul.f32 %v1352, 0.015625
    %v1354 = vsub.f32 %v1348, %v1353
    %v1355 = vmul.f32 %v1354, %v1354
    %v1356 = vsel %vm1349, %v1355, 0.0
    %1357 = vadd.xlane.f32.xlu0 %v1356
    %v1358 = vpop.xlane.xlu0 %1357
    %v1359 = vmul.f32 %v1353, %v1353
    %v1360 = vmul.f32 %v1359, 64.0
    %v1361 = vsub.f32 %v1358, %v1360
    %v1362 = vmul.f32 %v1361, 0.015625
    %v1363 = vadd.f32 %v1362, 1e-05
    %v1364 = vrsqrt.pop %v1363
    %v1365 = vmul.f32 %v1354, %v1364
    %v1366 = vlaneseq
    %v1367 = vshrl.u32 %v1366, 7
    %v1368 = vsub.s32 1, %v1367
    %v1369 = vrot.slane %v160, %v1368
    %v1370 = vmul.f32 %v1365, %v1369
    %v1371 = vlaneseq
    %v1372 = vshrl.u32 %v1371, 7
    %v1373 = vsub.s32 2, %v1372
    %v1374 = vrot.slane %v160, %v1373
    %v1375 = vadd.f32 %v1370, %v1374
    %v1376 = vpack.c.bf16 %v1375, %v1375
    %v1377 = vld [vmem:[#allocation11] sm:$0xff]
    %v1378 = vld [vmem:[#allocation11 + $0x8] sm:$0xff]
    %v1379 = vld [vmem:[#allocation11 + $0x10] sm:$0xff]
    %v1380 = vld [vmem:[#allocation11 + $0x18] sm:$0xff]
    %v1381 = vld [vmem:[#allocation11 + $0x20] sm:$0xff]
    %v1382 = vld [vmem:[#allocation11 + $0x28] sm:$0xff]
    %v1383 = vld [vmem:[#allocation11 + $0x30] sm:$0xff]
    %v1384 = vld [vmem:[#allocation11 + $0x38] sm:$0xff]
    %v1385 = vld [vmem:[#allocation11 + $0x40] sm:$0xff]
    %v1386 = vld [vmem:[#allocation11 + $0x48] sm:$0xff]
    %v1387 = vld [vmem:[#allocation11 + $0x50] sm:$0xff]
    %v1388 = vld [vmem:[#allocation11 + $0x58] sm:$0xff]
    %v1389 = vld [vmem:[#allocation11 + $0x60] sm:$0xff]
    %v1390 = vld [vmem:[#allocation11 + $0x68] sm:$0xff]
    %v1391 = vld [vmem:[#allocation11 + $0x70] sm:$0xff]
    %v1392 = vld [vmem:[#allocation11 + $0x78] sm:$0xff]
    %v1393 = vlaneseq
    %v1394 = vshrl.u32 %v1393, 7
    %v1395 = vsub.s32 1, %v1394
    %v1396 = vrot.slane %v159, %v1395
    %v1397 = vlaneseq
    %v1398 = vshrl.u32 %v1397, 7
    %v1399 = vsub.s32 5, %v1398
    %v1400 = vrot.slane %v159, %v1399
    %v1403 = vlaneseq
    %v1404 = vshrl.u32 %v1403, 7
    %v1405 = vsub.s32 1, %v1404
    %v1406 = vrot.slane %v1396, %v1405
    %v1407 = vlaneseq
    %v1408 = vshrl.u32 %v1407, 7
    %v1409 = vsub.s32 1, %v1408
    %v1410 = vrot.slane %v1400, %v1409
    %v1427 = vunpack.c.l.b16 %v1377
    %v1428 = vunpack.c.h.b16 %v1377
    %v1429 = vunpack.c.l.b16 %v1378
    %v1430 = vunpack.c.h.b16 %v1378
    %v1431 = vunpack.c.l.b16 %v1379
    %v1432 = vunpack.c.h.b16 %v1379
    %v1433 = vunpack.c.l.b16 %v1380
    %v1434 = vunpack.c.h.b16 %v1380
    %v1435 = vunpack.c.l.b16 %v1381
    %v1436 = vunpack.c.h.b16 %v1381
    %v1437 = vunpack.c.l.b16 %v1382
    %v1438 = vunpack.c.h.b16 %v1382
    %v1439 = vunpack.c.l.b16 %v1383
    %v1440 = vunpack.c.h.b16 %v1383
    %v1441 = vunpack.c.l.b16 %v1384
    %v1442 = vunpack.c.h.b16 %v1384
    %v1443 = vunpack.c.l.b16 %v1385
    %v1444 = vunpack.c.h.b16 %v1385
    %v1445 = vunpack.c.l.b16 %v1386
    %v1446 = vunpack.c.h.b16 %v1386
    %v1447 = vunpack.c.l.b16 %v1387
    %v1448 = vunpack.c.h.b16 %v1387
    %v1449 = vunpack.c.l.b16 %v1388
    %v1450 = vunpack.c.h.b16 %v1388
    %v1451 = vunpack.c.l.b16 %v1389
    %v1452 = vunpack.c.h.b16 %v1389
    %v1453 = vunpack.c.l.b16 %v1390
    %v1454 = vunpack.c.h.b16 %v1390
    %v1455 = vunpack.c.l.b16 %v1391
    %v1456 = vunpack.c.h.b16 %v1391
    %v1457 = vunpack.c.l.b16 %v1392
    %v1458 = vunpack.c.h.b16 %v1392
    %v1459 = vpack.c.b16 %v1429, %v1427
    %v1460 = vpack.c.b16 %v1430, %v1428
    %v1461 = vpack.c.b16 %v1433, %v1431
    %v1462 = vpack.c.b16 %v1434, %v1432
    %v1463 = vpack.c.b16 %v1437, %v1435
    %v1464 = vpack.c.b16 %v1438, %v1436
    %v1465 = vpack.c.b16 %v1441, %v1439
    %v1466 = vpack.c.b16 %v1442, %v1440
    %v1467 = vpack.c.b16 %v1445, %v1443
    %v1468 = vpack.c.b16 %v1446, %v1444
    %v1469 = vpack.c.b16 %v1449, %v1447
    %v1470 = vpack.c.b16 %v1450, %v1448
    %v1471 = vpack.c.b16 %v1453, %v1451
    %v1472 = vpack.c.b16 %v1454, %v1452
    %v1473 = vpack.c.b16 %v1457, %v1455
    %v1474 = vpack.c.b16 %v1458, %v1456
    %1491 = vmatprep.subr.bf16.mxu0 %v1460
    %1492 = vmatpush1.bf16.msra.mxu0 %v1459
    %1493 = vmatprep.subr.bf16.mxu0 %v1462
    %1494 = vmatpush1.bf16.msra.mxu0 %v1461
    %1495 = vmatprep.subr.bf16.mxu0 %v1464
    %1496 = vmatpush1.bf16.msra.mxu0 %v1463
    %1497 = vmatprep.subr.bf16.mxu0 %v1466
    %1498 = vmatpush1.bf16.msra.mxu0 %v1465
    %1499 = vmatprep.subr.bf16.mxu0 %v1468
    %1500 = vmatpush1.bf16.msra.mxu0 %v1467
    %1501 = vmatprep.subr.bf16.mxu0 %v1470
    %1502 = vmatpush1.bf16.msra.mxu0 %v1469
    %1503 = vmatprep.subr.bf16.mxu0 %v1472
    %1504 = vmatpush1.bf16.msra.mxu0 %v1471
    %1505 = vmatprep.subr.bf16.mxu0 %v1474
    %1506 = vmatpush1.bf16.msra.mxu0 %v1473
    %1507 = vmatprep.subr.bf16.mxu0 0
    %1508 = vmatpush1.bf16.msra.mxu0 0
    %1509 = vmatprep.subr.bf16.mxu0 0
    %1510 = vmatpush1.bf16.msra.mxu0 0
    %1511 = vmatprep.subr.bf16.mxu0 0
    %1512 = vmatpush1.bf16.msra.mxu0 0
    %1513 = vmatprep.subr.bf16.mxu0 0
    %1514 = vmatpush1.bf16.msra.mxu0 0
    %1515 = vmatprep.subr.bf16.mxu0 0
    %1516 = vmatpush1.bf16.msra.mxu0 0
    %1517 = vmatprep.subr.bf16.mxu0 0
    %1518 = vmatpush1.bf16.msra.mxu0 0
    %1519 = vmatprep.subr.bf16.mxu0 0
    %1520 = vmatpush1.bf16.msra.mxu0 0
    %1521 = vmatprep.subr.bf16.mxu0 0
    %1522 = vmatpush1.bf16.msra.mxu0 0
    %1523 = vmatprep.mubr.bf16.mxu0 0
    %1524 = vmatmul.mubr.bf16.gmra.mrb[0].mxu0 %v1376
    %v1525 = vpop.f32.mrb[0].mxu0
    %v1526 = vadd.f32 %v1406, %v1525
    %v1527 = vpop.f32.mrb[0].mxu0
    %v1528 = vadd.f32 %v1410, %v1527
    %v1529 = vpop.f32.mrb[0].mxu0
    %v1530 = vpop.f32.mrb[0].mxu0
    %1531 = vdwg.mxu0
    %v1532 = vmax.f32 %v1526, 0.0
    %v1533 = vmax.f32 %v1528, 0.0
    %v1534 = vsel %vm1349, %v1532, 0.0
    %v1535 = vsel %vm1349, %v1533, 0.0
    %v1536 = vadd.f32 %v1534, %v1535
    %1537 = vadd.xlane.f32.xlu0 %v1536
    %v1538 = vpop.xlane.xlu0 %1537
    %v1539 = vmul.f32 %v1538, 0.00390625
    %v1540 = vsub.f32 %v1532, %v1539
    %v1541 = vsub.f32 %v1533, %v1539
    %v1542 = vmul.f32 %v1540, %v1540
    %v1543 = vmul.f32 %v1541, %v1541
    %v1544 = vsel %vm1349, %v1542, 0.0
    %v1545 = vsel %vm1349, %v1543, 0.0
    %v1546 = vadd.f32 %v1544, %v1545
    %1547 = vadd.xlane.f32.xlu0 %v1546
    %v1548 = vpop.xlane.xlu0 %1547
    %v1549 = vmul.f32 %v1548, 0.00390625
    %v1550 = vadd.f32 %v1549, 1e-05
    %v1551 = vrsqrt.pop %v1550
    %v1552 = vmul.f32 %v1540, %v1551
    %v1553 = vmul.f32 %v1541, %v1551
    %v1554 = vlaneseq
    %v1555 = vshrl.u32 %v1554, 7
    %v1556 = vsub.s32 2, %v1555
    %v1557 = vrot.slane %v159, %v1556
    %v1558 = vlaneseq
    %v1559 = vshrl.u32 %v1558, 7
    %v1560 = vsub.s32 6, %v1559
    %v1561 = vrot.slane %v159, %v1560
    %v1564 = vlaneseq
    %v1565 = vshrl.u32 %v1564, 7
    %v1566 = vsub.s32 2, %v1565
    %v1567 = vrot.slane %v1557, %v1566
    %v1568 = vlaneseq
    %v1569 = vshrl.u32 %v1568, 7
    %v1570 = vsub.s32 2, %v1569
    %v1571 = vrot.slane %v1561, %v1570
    %v1572 = vmul.f32 %v1552, %v1567
    %v1573 = vmul.f32 %v1553, %v1571
    %v1574 = vlaneseq
    %v1575 = vshrl.u32 %v1574, 7
    %v1576 = vsub.s32 3, %v1575
    %v1577 = vrot.slane %v159, %v1576
    %v1578 = vlaneseq
    %v1579 = vshrl.u32 %v1578, 7
    %v1580 = vsub.s32 7, %v1579
    %v1581 = vrot.slane %v159, %v1580
    %v1584 = vlaneseq
    %v1585 = vshrl.u32 %v1584, 7
    %v1586 = vsub.s32 3, %v1585
    %v1587 = vrot.slane %v1577, %v1586
    %v1588 = vlaneseq
    %v1589 = vshrl.u32 %v1588, 7
    %v1590 = vsub.s32 3, %v1589
    %v1591 = vrot.slane %v1581, %v1590
    %v1592 = vadd.f32 %v1572, %v1587
    %v1593 = vadd.f32 %v1573, %v1591
    %v1594 = vpack.c.bf16 %v1592, %v1592
    %v1595 = vpack.c.bf16 %v1593, %v1593
    %v1596 = vld [vmem:[#allocation13] sm:$0xf]
    %v1597 = vld [vmem:[#allocation13 + $0x4] sm:$0xf]
    %v1598 = vld [vmem:[#allocation13 + $0x8] sm:$0xf]
    %v1599 = vld [vmem:[#allocation13 + $0xc] sm:$0xf]
    %v1600 = vld [vmem:[#allocation13 + $0x10] sm:$0xf]
    %v1601 = vld [vmem:[#allocation13 + $0x14] sm:$0xf]
    %v1602 = vld [vmem:[#allocation13 + $0x18] sm:$0xf]
    %v1603 = vld [vmem:[#allocation13 + $0x1c] sm:$0xf]
    %v1604 = vld [vmem:[#allocation13 + $0x20] sm:$0xf]
    %v1605 = vld [vmem:[#allocation13 + $0x24] sm:$0xf]
    %v1606 = vld [vmem:[#allocation13 + $0x28] sm:$0xf]
    %v1607 = vld [vmem:[#allocation13 + $0x2c] sm:$0xf]
    %v1608 = vld [vmem:[#allocation13 + $0x30] sm:$0xf]
    %v1609 = vld [vmem:[#allocation13 + $0x34] sm:$0xf]
    %v1610 = vld [vmem:[#allocation13 + $0x38] sm:$0xf]
    %v1611 = vld [vmem:[#allocation13 + $0x3c] sm:$0xf]
    %v1612 = vld [vmem:[#allocation13 + $0x40] sm:$0xf]
    %v1613 = vld [vmem:[#allocation13 + $0x44] sm:$0xf]
    %v1614 = vld [vmem:[#allocation13 + $0x48] sm:$0xf]
    %v1615 = vld [vmem:[#allocation13 + $0x4c] sm:$0xf]
    %v1616 = vld [vmem:[#allocation13 + $0x50] sm:$0xf]
    %v1617 = vld [vmem:[#allocation13 + $0x54] sm:$0xf]
    %v1618 = vld [vmem:[#allocation13 + $0x58] sm:$0xf]
    %v1619 = vld [vmem:[#allocation13 + $0x5c] sm:$0xf]
    %v1620 = vld [vmem:[#allocation13 + $0x60] sm:$0xf]
    %v1621 = vld [vmem:[#allocation13 + $0x64] sm:$0xf]
    %v1622 = vld [vmem:[#allocation13 + $0x68] sm:$0xf]
    %v1623 = vld [vmem:[#allocation13 + $0x6c] sm:$0xf]
    %v1624 = vld [vmem:[#allocation13 + $0x70] sm:$0xf]
    %v1625 = vld [vmem:[#allocation13 + $0x74] sm:$0xf]
    %v1626 = vld [vmem:[#allocation13 + $0x78] sm:$0xf]
    %v1627 = vld [vmem:[#allocation13 + $0x7c] sm:$0xf]
    %v1628 = vlaneseq
    %v1629 = vshrl.u32 %v1628, 7
    %v1630 = vsub.s32 0, %v1629
    %v1631 = vrot.slane %v161, %v1630
    %v1664 = vunpack.c.l.b16 %v1596
    %v1665 = vunpack.c.l.b16 %v1597
    %v1666 = vunpack.c.l.b16 %v1598
    %v1667 = vunpack.c.l.b16 %v1599
    %v1668 = vunpack.c.l.b16 %v1600
    %v1669 = vunpack.c.l.b16 %v1601
    %v1670 = vunpack.c.l.b16 %v1602
    %v1671 = vunpack.c.l.b16 %v1603
    %v1672 = vunpack.c.l.b16 %v1604
    %v1673 = vunpack.c.l.b16 %v1605
    %v1674 = vunpack.c.l.b16 %v1606
    %v1675 = vunpack.c.l.b16 %v1607
    %v1676 = vunpack.c.l.b16 %v1608
    %v1677 = vunpack.c.l.b16 %v1609
    %v1678 = vunpack.c.l.b16 %v1610
    %v1679 = vunpack.c.l.b16 %v1611
    %v1680 = vunpack.c.l.b16 %v1612
    %v1681 = vunpack.c.l.b16 %v1613
    %v1682 = vunpack.c.l.b16 %v1614
    %v1683 = vunpack.c.l.b16 %v1615
    %v1684 = vunpack.c.l.b16 %v1616
    %v1685 = vunpack.c.l.b16 %v1617
    %v1686 = vunpack.c.l.b16 %v1618
    %v1687 = vunpack.c.l.b16 %v1619
    %v1688 = vunpack.c.l.b16 %v1620
    %v1689 = vunpack.c.l.b16 %v1621
    %v1690 = vunpack.c.l.b16 %v1622
    %v1691 = vunpack.c.l.b16 %v1623
    %v1692 = vunpack.c.l.b16 %v1624
    %v1693 = vunpack.c.l.b16 %v1625
    %v1694 = vunpack.c.l.b16 %v1626
    %v1695 = vunpack.c.l.b16 %v1627
    %v1696 = vpack.c.b16 %v1665, %v1664
    %v1697 = vpack.c.b16 %v1667, %v1666
    %v1698 = vpack.c.b16 %v1669, %v1668
    %v1699 = vpack.c.b16 %v1671, %v1670
    %v1700 = vpack.c.b16 %v1673, %v1672
    %v1701 = vpack.c.b16 %v1675, %v1674
    %v1702 = vpack.c.b16 %v1677, %v1676
    %v1703 = vpack.c.b16 %v1679, %v1678
    %v1704 = vpack.c.b16 %v1681, %v1680
    %v1705 = vpack.c.b16 %v1683, %v1682
    %v1706 = vpack.c.b16 %v1685, %v1684
    %v1707 = vpack.c.b16 %v1687, %v1686
    %v1708 = vpack.c.b16 %v1689, %v1688
    %v1709 = vpack.c.b16 %v1691, %v1690
    %v1710 = vpack.c.b16 %v1693, %v1692
    %v1711 = vpack.c.b16 %v1695, %v1694
    %1728 = vmatprep.subr.bf16.mxu0 0
    %1729 = vmatpush1.bf16.msra.mxu0 %v1696
    %1730 = vmatprep.subr.bf16.mxu0 0
    %1731 = vmatpush1.bf16.msra.mxu0 %v1697
    %1732 = vmatprep.subr.bf16.mxu0 0
    %1733 = vmatpush1.bf16.msra.mxu0 %v1698
    %1734 = vmatprep.subr.bf16.mxu0 0
    %1735 = vmatpush1.bf16.msra.mxu0 %v1699
    %1736 = vmatprep.subr.bf16.mxu0 0
    %1737 = vmatpush1.bf16.msra.mxu0 %v1700
    %1738 = vmatprep.subr.bf16.mxu0 0
    %1739 = vmatpush1.bf16.msra.mxu0 %v1701
    %1740 = vmatprep.subr.bf16.mxu0 0
    %1741 = vmatpush1.bf16.msra.mxu0 %v1702
    %1742 = vmatprep.subr.bf16.mxu0 0
    %1743 = vmatpush1.bf16.msra.mxu0 %v1703
    %1744 = vmatprep.subr.bf16.mxu0 0
    %1745 = vmatpush1.bf16.msra.mxu0 %v1704
    %1746 = vmatprep.subr.bf16.mxu0 0
    %1747 = vmatpush1.bf16.msra.mxu0 %v1705
    %1748 = vmatprep.subr.bf16.mxu0 0
    %1749 = vmatpush1.bf16.msra.mxu0 %v1706
    %1750 = vmatprep.subr.bf16.mxu0 0
    %1751 = vmatpush1.bf16.msra.mxu0 %v1707
    %1752 = vmatprep.subr.bf16.mxu0 0
    %1753 = vmatpush1.bf16.msra.mxu0 %v1708
    %1754 = vmatprep.subr.bf16.mxu0 0
    %1755 = vmatpush1.bf16.msra.mxu0 %v1709
    %1756 = vmatprep.subr.bf16.mxu0 0
    %1757 = vmatpush1.bf16.msra.mxu0 %v1710
    %1758 = vmatprep.subr.bf16.mxu0 0
    %1759 = vmatpush1.bf16.msra.mxu0 %v1711
    %1760 = vmatprep.mubr.bf16.mxu0 %v1595
    %1761 = vmatmul.mubr.bf16.gmra.mrb[0].mxu0 %v1594
    %v1762 = vpop.f32.mrb[0].mxu0
    %v1763 = vadd.f32 %v1631, %v1762
    %v1764 = vpop.f32.mrb[0].mxu0
    %v1765 = vpop.f32.mrb[0].mxu0
    %v1766 = vpop.f32.mrb[0].mxu0
    %1767 = vdwg.mxu0
    %1768 = vst [vmem:[#allocation17] sm:$0x3] %v1763
    %v1769 = vld [vmem:[#allocation14] sm:$0xf]
    %v1770 = vld [vmem:[#allocation14 + $0x4] sm:$0xf]
    %v1771 = vld [vmem:[#allocation14 + $0x8] sm:$0xf]
    %v1772 = vld [vmem:[#allocation14 + $0xc] sm:$0xf]
    %v1773 = vunpack.c.l.bf16 %v1769
    %v1774 = vunpack.c.l.bf16 %v1770
    %v1775 = vunpack.c.l.bf16 %v1771
    %v1776 = vunpack.c.l.bf16 %v1772
    %v1777 = vlaneseq
    %v1778 = vshrl.u32 %v1777, 7
    %v1779 = vadd.s32 %v1778, 8
    %vm1780 = vcmp.eq.s32.totalorder %v1778, 0
    %vm1781 = vcmp.eq.s32.totalorder %v1779, 0
    %v1784 = vunpack.c.l.s4 1966171168
    %v1785 = vunpack.c.0.s8 %v1784
    %v1786 = vlaneseq
    %v1787 = vshrl.u32 %v1786, 7
    %v1788 = vsub.s32 %v1785, %v1787
    %v1789 = vrot.slane %v1763, %v1788
    %v1790 = vcombine.high %v1789, %v1789
    %v1792 = vunpack.c.l.s4 1966171168
    %v1793 = vunpack.c.0.s8 %v1792
    %v1794 = vlaneseq
    %v1795 = vshrl.u32 %v1794, 7
    %v1796 = vsub.s32 %v1793, %v1795
    %v1797 = vrot.slane %v1789, %v1796
    %v1799 = vunpack.c.l.s4 1966171168
    %v1800 = vunpack.c.0.s8 %v1799
    %v1801 = vlaneseq
    %v1802 = vshrl.u32 %v1801, 7
    %v1803 = vsub.s32 %v1800, %v1802
    %v1804 = vrot.slane %v1790, %v1803
    %v1805 = vlaneseq
    %v1806 = vshrl.u32 %v1805, 7
    %v1807 = vsub.s32 0, %v1806
    %v1808 = vrot.slane %v1797, %v1807
    %v1809 = vlaneseq
    %v1810 = vshrl.u32 %v1809, 7
    %v1811 = vsub.s32 0, %v1810
    %v1812 = vrot.slane %v1804, %v1811
    %v1815 = vsel %vm1780, %v1808, %v1773
    %v1816 = vsel %vm1781, %v1808, %v1774
    %v1817 = vsel %vm1780, %v1812, %v1775
    %v1818 = vsel %vm1781, %v1812, %v1776
    %v1819 = vadd.f32 %v1815, %v162
    %v1820 = vadd.f32 %v1816, %v163
    %v1821 = vadd.f32 %v1817, %v162
    %v1822 = vadd.f32 %v1818, %v163
    %1823 = vadd.xlane.f32.xlu0 %v1819
    %v1824 = vpop.xlane.xlu0 %1823
    %1825 = vadd.xlane.f32.xlu0 %v1820
    %v1826 = vpop.xlane.xlu0 %1825
    %1827 = vadd.xlane.f32.xlu0 %v1821
    %v1828 = vpop.xlane.xlu0 %1827
    %1829 = vadd.xlane.f32.xlu0 %v1822
    %v1830 = vpop.xlane.xlu0 %1829
    %v1831 = vmul.f32 %v1824, 0.03125
    %v1832 = vmul.f32 %v1826, 0.03125
    %v1833 = vmul.f32 %v1828, 0.03125
    %v1834 = vmul.f32 %v1830, 0.03125
    %v1835 = vsub.f32 %v1819, %v1831
    %v1836 = vsub.f32 %v1820, %v1832
    %v1837 = vsub.f32 %v1821, %v1833
    %v1838 = vsub.f32 %v1822, %v1834
    %v1839 = vmul.f32 %v1835, %v1835
    %v1840 = vmul.f32 %v1836, %v1836
    %v1841 = vmul.f32 %v1837, %v1837
    %v1842 = vmul.f32 %v1838, %v1838
    %1843 = vadd.xlane.f32.xlu0 %v1839
    %v1844 = vpop.xlane.xlu0 %1843
    %1845 = vadd.xlane.f32.xlu0 %v1840
    %v1846 = vpop.xlane.xlu0 %1845
    %1847 = vadd.xlane.f32.xlu0 %v1841
    %v1848 = vpop.xlane.xlu0 %1847
    %1849 = vadd.xlane.f32.xlu0 %v1842
    %v1850 = vpop.xlane.xlu0 %1849
    %v1851 = vmul.f32 %v1831, %v1831
    %v1852 = vmul.f32 %v1832, %v1832
    %v1853 = vmul.f32 %v1833, %v1833
    %v1854 = vmul.f32 %v1834, %v1834
    %v1855 = vmul.f32 %v1851, 96.0
    %v1856 = vmul.f32 %v1852, 96.0
    %v1857 = vmul.f32 %v1853, 96.0
    %v1858 = vmul.f32 %v1854, 96.0
    %v1859 = vsub.f32 %v1844, %v1855
    %v1860 = vsub.f32 %v1846, %v1856
    %v1861 = vsub.f32 %v1848, %v1857
    %v1862 = vsub.f32 %v1850, %v1858
    %v1863 = vmul.f32 %v1859, 0.03125
    %v1864 = vmul.f32 %v1860, 0.03125
    %v1865 = vmul.f32 %v1861, 0.03125
    %v1866 = vmul.f32 %v1862, 0.03125
    %v1867 = vadd.f32 %v1863, 1e-05
    %v1868 = vadd.f32 %v1864, 1e-05
    %v1869 = vadd.f32 %v1865, 1e-05
    %v1870 = vadd.f32 %v1866, 1e-05
    %v1871 = vrsqrt.pop %v1867
    %v1872 = vrsqrt.pop %v1868
    %v1873 = vrsqrt.pop %v1869
    %v1874 = vrsqrt.pop %v1870
    %v1875 = vmul.f32 %v1835, %v1871
    %v1876 = vmul.f32 %v1836, %v1872
    %v1877 = vmul.f32 %v1837, %v1873
    %v1878 = vmul.f32 %v1838, %v1874
    %v1879 = vlaneseq
    %v1880 = vshrl.u32 %v1879, 7
    %v1881 = vsub.s32 1, %v1880
    %v1882 = vrot.slane %v161, %v1881
    %v1883 = vmul.f32 %v1875, %v1882
    %v1884 = vmul.f32 %v1876, %v1882
    %v1885 = vmul.f32 %v1877, %v1882
    %v1886 = vmul.f32 %v1878, %v1882
    %v1887 = vlaneseq
    %v1888 = vshrl.u32 %v1887, 7
    %v1889 = vsub.s32 2, %v1888
    %v1890 = vrot.slane %v161, %v1889
    %v1891 = vadd.f32 %v1883, %v1890
    %v1892 = vadd.f32 %v1884, %v1890
    %v1893 = vadd.f32 %v1885, %v1890
    %v1894 = vadd.f32 %v1886, %v1890
    %v1895 = vpack.c.bf16 %v1892, %v1891
    %v1896 = vpack.c.bf16 %v1894, %v1893
    %v1897 = vld [vmem:[#allocation16] sm:$0xf]
    %v1898 = vld [vmem:[#allocation16 + $0x4] sm:$0xf]
    %v1899 = vld [vmem:[#allocation16 + $0x8] sm:$0xf]
    %v1900 = vld [vmem:[#allocation16 + $0xc] sm:$0xf]
    %v1901 = vld [vmem:[#allocation16 + $0x10] sm:$0xf]
    %v1902 = vld [vmem:[#allocation16 + $0x14] sm:$0xf]
    %v1903 = vld [vmem:[#allocation16 + $0x18] sm:$0xf]
    %v1904 = vld [vmem:[#allocation16 + $0x1c] sm:$0xf]
    %v1905 = vld [vmem:[#allocation16 + $0x20] sm:$0xf]
    %v1906 = vld [vmem:[#allocation16 + $0x24] sm:$0xf]
    %v1907 = vld [vmem:[#allocation16 + $0x28] sm:$0xf]
    %v1908 = vld [vmem:[#allocation16 + $0x2c] sm:$0xf]
    %v1909 = vld [vmem:[#allocation16 + $0x30] sm:$0xf]
    %v1910 = vld [vmem:[#allocation16 + $0x34] sm:$0xf]
    %v1911 = vld [vmem:[#allocation16 + $0x38] sm:$0xf]
    %v1912 = vld [vmem:[#allocation16 + $0x3c] sm:$0xf]
    %v1913 = vld [vmem:[%s10] sm:$0x1]
    %v1915 = vlaneseq
    %v1916 = vshrl.u32 %v1915, 7
    %v1917 = vsub.s32 0, %v1916
    %v1918 = vrot.slane %v1913, %v1917
    %v1936 = vunpack.c.l.b16 %v1897
    %v1937 = vunpack.c.l.b16 %v1898
    %v1938 = vunpack.c.l.b16 %v1899
    %v1939 = vunpack.c.l.b16 %v1900
    %v1940 = vunpack.c.l.b16 %v1901
    %v1941 = vunpack.c.l.b16 %v1902
    %v1942 = vunpack.c.l.b16 %v1903
    %v1943 = vunpack.c.l.b16 %v1904
    %v1944 = vunpack.c.l.b16 %v1905
    %v1945 = vunpack.c.l.b16 %v1906
    %v1946 = vunpack.c.l.b16 %v1907
    %v1947 = vunpack.c.l.b16 %v1908
    %v1948 = vunpack.c.l.b16 %v1909
    %v1949 = vunpack.c.l.b16 %v1910
    %v1950 = vunpack.c.l.b16 %v1911
    %v1951 = vunpack.c.l.b16 %v1912
    %v1952 = vpack.c.b16 %v1937, %v1936
    %v1953 = vpack.c.b16 %v1939, %v1938
    %v1954 = vpack.c.b16 %v1941, %v1940
    %v1955 = vpack.c.b16 %v1943, %v1942
    %v1956 = vpack.c.b16 %v1945, %v1944
    %v1957 = vpack.c.b16 %v1947, %v1946
    %v1958 = vpack.c.b16 %v1949, %v1948
    %v1959 = vpack.c.b16 %v1951, %v1950
    %1968 = vmatprep.subr.bf16.mxu0 0
    %1969 = vmatpush1.bf16.msra.mxu0 %v1952
    %1970 = vmatprep.subr.bf16.mxu0 0
    %1971 = vmatpush1.bf16.msra.mxu0 %v1953
    %1972 = vmatprep.subr.bf16.mxu0 0
    %1973 = vmatpush1.bf16.msra.mxu0 %v1954
    %1974 = vmatprep.subr.bf16.mxu0 0
    %1975 = vmatpush1.bf16.msra.mxu0 %v1955
    %1976 = vmatprep.subr.bf16.mxu0 0
    %1977 = vmatpush1.bf16.msra.mxu0 %v1956
    %1978 = vmatprep.subr.bf16.mxu0 0
    %1979 = vmatpush1.bf16.msra.mxu0 %v1957
    %1980 = vmatprep.subr.bf16.mxu0 0
    %1981 = vmatpush1.bf16.msra.mxu0 %v1958
    %1982 = vmatprep.subr.bf16.mxu0 0
    %1983 = vmatpush1.bf16.msra.mxu0 %v1959
    %1984 = vmatprep.subr.bf16.mxu0 0
    %1985 = vmatpush1.bf16.msra.mxu0 0
    %1986 = vmatprep.subr.bf16.mxu0 0
    %1987 = vmatpush1.bf16.msra.mxu0 0
    %1988 = vmatprep.subr.bf16.mxu0 0
    %1989 = vmatpush1.bf16.msra.mxu0 0
    %1990 = vmatprep.subr.bf16.mxu0 0
    %1991 = vmatpush1.bf16.msra.mxu0 0
    %1992 = vmatprep.subr.bf16.mxu0 0
    %1993 = vmatpush1.bf16.msra.mxu0 0
    %1994 = vmatprep.subr.bf16.mxu0 0
    %1995 = vmatpush1.bf16.msra.mxu0 0
    %1996 = vmatprep.subr.bf16.mxu0 0
    %1997 = vmatpush1.bf16.msra.mxu0 0
    %1998 = vmatprep.subr.bf16.mxu0 0
    %1999 = vmatpush1.bf16.msra.mxu0 0
    %2000 = vmatprep.mubr.bf16.mxu0 0
    %2001 = vmatmul.mubr.bf16.gmra.mrb[0].mxu0 %v1895
    %v2002 = vpop.f32.mrb[0].mxu0
    %v2003 = vadd.f32 %v1918, %v2002
    %v2004 = vpop.f32.mrb[0].mxu0
    %v2005 = vpop.f32.mrb[0].mxu0
    %v2006 = vadd.f32 %v1918, %v2005
    %v2007 = vpop.f32.mrb[0].mxu0
    %2008 = vmatprep.mubr.bf16.mxu0 0
    %2009 = vmatmul.mubr.bf16.gmra.mrb[0].mxu0 %v1896
    %v2010 = vpop.f32.mrb[0].mxu0
    %v2011 = vadd.f32 %v1918, %v2010
    %v2012 = vpop.f32.mrb[0].mxu0
    %v2013 = vpop.f32.mrb[0].mxu0
    %v2014 = vadd.f32 %v1918, %v2013
    %v2015 = vpop.f32.mrb[0].mxu0
    %2016 = vdwg.mxu0
    %2017 = vst [vmem:[#allocation18] sm:$0xff] %v2003
    %2018 = vst [vmem:[#allocation18 + $0x8] sm:$0xff] %v2006
    %2019 = vst [vmem:[#allocation18 + $0x10] sm:$0xff] %v2011
    %2020 = vst [vmem:[#allocation18 + $0x18] sm:$0xff] %v2014
    // Predicated region
    $region82: #{tpu_custom_call.1} parent=1 // pred_check
      _
    $region83: #{tpu_custom_call.1} parent=1 // pred_check_branch
      %2022 = sbr.rel (0) target = $region85
    $region84: #{tpu_custom_call.1} parent=1 // pred_region
      %s2024 = ssub.s32 32, 32
      %2025 = vsyncadd [#allocation4], %s2024
      %s2027 = sshll.u32 [#allocation17], 4
      %s2028 = int_to_ptr.vmem [resolvable:$true] %s2027
      %2030 = dma.vmem_to_hbm [thread:$0]  %s2028, 32, %s11, [#allocation4]
    $region85: #{tpu_custom_call.1} parent=1 // pred_fallthru
      _
    // Predicated region
    $region86: #{tpu_custom_call.1} parent=1 // pred_check
      _
    $region87: #{tpu_custom_call.1} parent=1 // pred_check_branch
      %2032 = sbr.rel (0) target = $region89
    $region88: #{tpu_custom_call.1} parent=1 // pred_region
      %s2034 = ssub.s32 512, 512
      %2035 = vsyncadd [#allocation19], %s2034
      %s2036 = sshll.u32 [#allocation18], 4
      %s2037 = int_to_ptr.vmem [resolvable:$true] %s2036
      %2042 = dma.vmem_to_hbm [thread:$0]  %s2037, 512, %s12, [#allocation19], 128, 128, 8
    $region89: #{tpu_custom_call.1} parent=1 // pred_fallthru
      _
    // Predicated region
    $region90: #{tpu_custom_call.1} parent=1 // pred_check
      _
    $region91: #{tpu_custom_call.1} parent=1 // pred_check_branch
      %2044 = sbr.rel (0) target = $region93
    $region92: #{tpu_custom_call.1} parent=1 // pred_region
      %2045 = dma.done [#allocation4], 32
    $region93: #{tpu_custom_call.1} parent=1 // pred_fallthru
      _
    // Predicated region
    $region94: #{tpu_custom_call.1} parent=1 // pred_check
      _
    $region95: #{tpu_custom_call.1} parent=1 // pred_check_branch
      %2047 = sbr.rel (0) target = $region97
    $region96: #{tpu_custom_call.1} parent=1 // pred_region
      %2048 = dma.done [#allocation19], 512
    $region97: #{tpu_custom_call.1} parent=1 // pred_fallthru
      _
    %2049 = vsyncpa [#allocation3], 1
    %2050 = vsyncpa [#allocation6], 1
    %2051 = vsyncpa [#allocation9], 1
    %2052 = vsyncpa [#allocation12], 1
    %2053 = vsyncpa [#allocation15], 1
    %2054 = vsyncpa [#allocation4], 1
    %2055 = vsyncpa [#allocation19], 1

</llo_original>
